<compile_context>
chip_gen: v7x
topology: tpu7x:2x2x1
jax: 0.10.0
libtpu: 0.0.40
codegen_flags: <defaults>
</compile_context>

<pallas_src>
import functools

import jax
import jax.numpy as jnp
import numpy as np
from jax import lax
from jax.experimental import pallas as pl
from jax.experimental.pallas import tpu as pltpu


def dqn_kernel(x_ref, w1_ref, b1_ref, wih_ref, whh_ref, bl_ref, w2_ref, b2_ref,
               h0_ref, c0_ref,
               out_ref, hn_ref, cn_ref,
               gx_ref, hall_ref, call_ref,
               *, t_last):
    """Fused forward pass (all shapes pre-padded in the wrapper).

    x_ref   : (Tp, Fp)   bf16   state_input
    w1/b1   : (Fp, Hp) bf16, (1, Hp) f32       mlp1 (pre-transposed)
    wih     : (Hp, 4*Hcp) bf16                 LSTM W_ih^T (gate order i,f,g,o)
    whh     : (Hcp, 4*Hcp) bf16                LSTM W_hh^T
    bl      : (1, 4*Hcp) f32                   b_ih + b_hh
    w2/b2   : (Hcp, Ap) bf16, (1, Ap) f32      mlp2 (pre-transposed)
    h0/c0   : (1, Hcp) f32                     initial LSTM state (batch = 1)
    out     : (Tp, Ap) f32                     mlp2(sigmoid(lstm_out))
    hn/cn   : (1, Hcp) f32                     LSTM state at true step t_last
    gx_ref  : VMEM scratch (Tp, 4*Hcp) f32     input-side gate pre-activations
    hall_ref: VMEM scratch (Tp, Hcp) f32       per-step hidden states
    call_ref: VMEM scratch (Tp, Hcp) f32       per-step cell states
    """
    Hcp = h0_ref.shape[-1]
    Tp = x_ref.shape[0]
    bf16 = jnp.bfloat16

    # mlp1 + sigmoid for all timesteps at once (bf16 MXU, f32 accumulate).
    m = jax.nn.sigmoid(
        jnp.dot(x_ref[...], w1_ref[...], preferred_element_type=jnp.float32)
        + b1_ref[...])

    # Input-side LSTM gate pre-activations for every timestep: one big matmul.
    # Bias (b_ih + b_hh) folded in once here, NOT per recurrence step.
    gx_ref[...] = (
        jnp.dot(m.astype(bf16), wih_ref[...],
                preferred_element_type=jnp.float32) + bl_ref[...])

    # Sequential LSTM recurrence, unrolled by 8 (one full sublane tile per
    # gx load / hall+call store).  The per-step h @ whh matmul has M=1 and is
    # the serial bottleneck by construction (single sequence, batch=1);
    # bf16 weights halve its MXU streaming cost.
    def block_step(blk, carry):
        h, c = carry                                       # (1, Hcp) f32
        base = pl.multiple_of(blk * 8, 8)
        g_blk = gx_ref[pl.ds(base, 8), :]                  # (8, 4*Hcp) tile
        h_rows = []
        c_rows = []
        for j in range(8):                                 # static unroll
            g = g_blk[j:j + 1, :] + jnp.dot(
                h.astype(bf16), whh_ref[...],
                preferred_element_type=jnp.float32)        # (1, 4*Hcp)
            # Gate slices are 128-lane aligned because Hcp % 128 == 0.
            i_g = jax.nn.sigmoid(g[:, 0 * Hcp:1 * Hcp])
            f_g = jax.nn.sigmoid(g[:, 1 * Hcp:2 * Hcp])
            g_g = jnp.tanh(g[:, 2 * Hcp:3 * Hcp])
            o_g = jax.nn.sigmoid(g[:, 3 * Hcp:4 * Hcp])
            c = f_g * c + i_g * g_g
            h = o_g * jnp.tanh(c)
            h_rows.append(h)
            c_rows.append(c)
        # One full-tile (8, Hcp) store per block instead of 8 masked row stores.
        hall_ref[pl.ds(base, 8), :] = jnp.concatenate(h_rows, axis=0)
        call_ref[pl.ds(base, 8), :] = jnp.concatenate(c_rows, axis=0)
        return (h, c)

    lax.fori_loop(0, Tp // 8, block_step, (h0_ref[...], c0_ref[...]))

    # Final LSTM state at the true (unpadded) last timestep.
    hn_ref[...] = hall_ref[pl.ds(t_last, 1), :]
    cn_ref[...] = call_ref[pl.ds(t_last, 1), :]

    # mlp2(sigmoid(lstm_out)) for all timesteps at once; output is lane-dense
    # (Ap is a multiple of 128) so the store is an unmasked full vst.
    out_ref[...] = (
        jnp.dot(jax.nn.sigmoid(hall_ref[...]).astype(bf16), w2_ref[...],
                preferred_element_type=jnp.float32) + b2_ref[...])


def _round_up(n, m):
    return ((n + m - 1) // m) * m


def _pad2(a, rows, cols, dtype):
    return jnp.pad(a, ((0, rows - a.shape[0]),
                       (0, cols - a.shape[1]))).astype(dtype)


def dqnetwork_simple_forward(state_input, h_state, params):
    """state_input: (T, F) float32; h_state: (h0, c0) each (1, 1, Hc)."""
    T, F = state_input.shape
    H = params["w1"].shape[1]
    Hc = params["whh"].shape[0]
    A = params["w2"].shape[1]

    Tp = _round_up(T, 8)
    Fp = _round_up(F, 128)
    Hp = _round_up(H, 128)
    Hcp = _round_up(Hc, 128)
    Ap = _round_up(A, 128)

    f32 = jnp.float32
    bf16 = jnp.bfloat16

    # Zero-padding correctness:
    #  * padded wih/whh rows & per-gate cols and padded bl are 0, so padded
    #    gate pre-activations are exactly 0 -> i=f=o=0.5, g=tanh(0)=0 there;
    #    with padded h0/c0 lanes = 0 the padded c lanes stay 0 and the padded
    #    h lanes stay 0 for all steps.
    #  * m's padded columns equal sigmoid(0)=0.5 but hit zero wih rows.
    #  * sigmoid(hall) padded columns equal 0.5 but hit zero w2 rows, and
    #    padded A columns of out are sliced away below.
    x_p = _pad2(state_input, Tp, Fp, bf16)
    w1_p = _pad2(params["w1"], Fp, Hp, bf16)
    b1_p = _pad2(params["b1"], 1, Hp, f32)

    def pad_gate_cols(a, rows_p, dtype):
        # (rows, 4*Hc) -> (rows_p, 4*Hcp), padding each gate block separately
        # so gate k starts at lane k*Hcp (128-aligned slices in the kernel).
        rows = a.shape[0]
        a4 = a.reshape(rows, 4, Hc)
        a4 = jnp.pad(a4, ((0, rows_p - rows), (0, 0), (0, Hcp - Hc)))
        return a4.reshape(rows_p, 4 * Hcp).astype(dtype)

    wih_p = pad_gate_cols(params["wih"], Hp, bf16)
    whh_p = pad_gate_cols(params["whh"], Hcp, bf16)
    bl_p = pad_gate_cols(params["bl"], 1, f32)
    w2_p = _pad2(params["w2"], Hcp, Ap, bf16)
    b2_p = _pad2(params["b2"], 1, Ap, f32)

    h0, c0 = h_state
    h0_p = _pad2(h0.reshape(1, Hc), 1, Hcp, f32)
    c0_p = _pad2(c0.reshape(1, Hc), 1, Hcp, f32)

    # Explicit, deterministic VMEM budget (inputs + outputs + scratch + slack).
    def nbytes(shape, dt):
        return int(np.prod(shape)) * jnp.dtype(dt).itemsize

    vmem_need = (
        nbytes((Tp, Fp), bf16) + nbytes((Fp, Hp), bf16) + nbytes((1, Hp), f32)
        + nbytes((Hp, 4 * Hcp), bf16) + nbytes((Hcp, 4 * Hcp), bf16)
        + nbytes((1, 4 * Hcp), f32) + nbytes((Hcp, Ap), bf16)
        + nbytes((1, Ap), f32) + 2 * nbytes((1, Hcp), f32)
        + nbytes((Tp, Ap), f32) + 2 * nbytes((1, Hcp), f32)
        + nbytes((Tp, 4 * Hcp), f32) + 2 * nbytes((Tp, Hcp), f32))
    vmem_limit = int(min(64 * 1024 * 1024, vmem_need + 8 * 1024 * 1024))

    vspec = pl.BlockSpec(memory_space=pltpu.MemorySpace.VMEM)
    kernel = functools.partial(dqn_kernel, t_last=T - 1)

    out_p, hn_p, cn_p = pl.pallas_call(
        kernel,
        out_shape=(
            jax.ShapeDtypeStruct((Tp, Ap), f32),
            jax.ShapeDtypeStruct((1, Hcp), f32),
            jax.ShapeDtypeStruct((1, Hcp), f32),
        ),
        in_specs=[vspec] * 10,
        out_specs=(vspec, vspec, vspec),
        scratch_shapes=[
            pltpu.VMEM((Tp, 4 * Hcp), f32),
            pltpu.VMEM((Tp, Hcp), f32),
            pltpu.VMEM((Tp, Hcp), f32),
        ],
        compiler_params=pltpu.CompilerParams(vmem_limit_bytes=vmem_limit),
    )(x_p, w1_p, b1_p, wih_p, whh_p, bl_p, w2_p, b2_p, h0_p, c0_p)

    out = out_p[:T, :A]
    hn = hn_p[:, :Hc]
    cn = cn_p[:, :Hc]

    # PyTorch shapes: out (T, 1, A); h_out = (h_n, c_n) each (1, 1, Hc).
    return out[:, None, :], (hn[None], cn[None])


def make_params(key, feature_size, hidden_size, action_space_dim):
    Hc = hidden_size // 2
    ks = jax.random.split(key, 8)
    u = lambda k, shape, bound: jax.random.uniform(
        k, shape, jnp.float32, -bound, bound)
    b1v = 1.0 / np.sqrt(feature_size)
    blv = 1.0 / np.sqrt(Hc)
    b2v = 1.0 / np.sqrt(Hc)
    return {
        "w1": u(ks[0], (feature_size, hidden_size), b1v),
        "b1": u(ks[1], (1, hidden_size), b1v),
        "wih": u(ks[2], (hidden_size, 4 * Hc), blv),
        "whh": u(ks[3], (Hc, 4 * Hc), blv),
        "bl": u(ks[4], (1, 4 * Hc), blv),
        "w2": u(ks[5], (Hc, action_space_dim), b2v),
        "b2": u(ks[6], (1, action_space_dim), b2v),
    }


def reference_forward(state_input, h_state, params):
    """Pure-JAX (f32) reference of the PyTorch forward for validation."""
    Hc = params["whh"].shape[0]
    m = jax.nn.sigmoid(state_input @ params["w1"] + params["b1"])
    h0, c0 = h_state
    h = h0.reshape(1, Hc)
    c = c0.reshape(1, Hc)

    def step(carry, x_t):
        h, c = carry
        g = x_t[None, :] @ params["wih"] + h @ params["whh"] + params["bl"]
        i = jax.nn.sigmoid(g[:, :Hc])
        f = jax.nn.sigmoid(g[:, Hc:2 * Hc])
        gg = jnp.tanh(g[:, 2 * Hc:3 * Hc])
        o = jax.nn.sigmoid(g[:, 3 * Hc:])
        c = f * c + i * gg
        h = o * jnp.tanh(c)
        return (h, c), h[0]

    (h, c), hs = lax.scan(step, (h, c), m)
    out = jax.nn.sigmoid(hs) @ params["w2"] + params["b2"]
    return out[:, None, :], (h[None], c[None])


if __name__ == "__main__":
    feature_size, hidden_size, action_space_dim = 64, 32, 4
    Hc = hidden_size // 2
    T = 8  # number of rows of state_input -> LSTM sequence length

    key = jax.random.PRNGKey(0)
    kp, kx, kh, kc = jax.random.split(key, 4)
    params = make_params(kp, feature_size, hidden_size, action_space_dim)

    state_input = jax.random.normal(kx, (T, feature_size), jnp.float32)
    h0 = jax.random.normal(kh, (1, 1, Hc), jnp.float32)
    c0 = jax.random.normal(kc, (1, 1, Hc), jnp.float32)

    out, (hn, cn) = dqnetwork_simple_forward(state_input, (h0, c0), params)
    out = jax.block_until_ready(out)
    hn = jax.block_until_ready(hn)
    cn = jax.block_until_ready(cn)

    # Validate against a pure-JAX f32 reference of the PyTorch semantics.
    # (Kernel uses bf16 weights/MXU operands with f32 accumulation, hence the
    #  slightly looser tolerance.)
    ref_out, (ref_hn, ref_cn) = reference_forward(state_input, (h0, c0), params)
    np.testing.assert_allclose(np.asarray(out), np.asarray(ref_out),
                               rtol=2e-2, atol=2e-2)
    np.testing.assert_allclose(np.asarray(hn), np.asarray(ref_hn),
                               rtol=2e-2, atol=2e-2)
    np.testing.assert_allclose(np.asarray(cn), np.asarray(ref_cn),
                               rtol=2e-2, atol=2e-2)

    print("KERNEL_OK")
</pallas_src>

<mosaic_0001>
module attributes {stable_mosaic.version = 11 : i64} {
  func.func @dqn_kernel(%arg0: memref<8x128xbf16, #tpu.memory_space<vmem>>, %arg1: memref<128x128xbf16, #tpu.memory_space<vmem>>, %arg2: memref<1x128xf32, #tpu.memory_space<vmem>>, %arg3: memref<128x512xbf16, #tpu.memory_space<vmem>>, %arg4: memref<128x512xbf16, #tpu.memory_space<vmem>>, %arg5: memref<1x512xf32, #tpu.memory_space<vmem>>, %arg6: memref<128x128xbf16, #tpu.memory_space<vmem>>, %arg7: memref<1x128xf32, #tpu.memory_space<vmem>>, %arg8: memref<1x128xf32, #tpu.memory_space<vmem>>, %arg9: memref<1x128xf32, #tpu.memory_space<vmem>>, %arg10: memref<8x128xf32, #tpu.memory_space<vmem>>, %arg11: memref<1x128xf32, #tpu.memory_space<vmem>>, %arg12: memref<1x128xf32, #tpu.memory_space<vmem>>, %arg13: memref<8x512xf32, #tpu.memory_space<vmem>>, %arg14: memref<8x128xf32, #tpu.memory_space<vmem>>, %arg15: memref<8x128xf32, #tpu.memory_space<vmem>>) attributes {dimension_semantics = [], scalar_prefetch = 0 : i64, scratch_operands = 3 : i64, tpu.core_type = #tpu.core_type<tc>} {
    %c0 = arith.constant 0 : index
    %c0_0 = arith.constant 0 : index
    %0 = vector.load %arg0[%c0, %c0_0] : memref<8x128xbf16, #tpu.memory_space<vmem>>, vector<8x128xbf16>
    %c0_1 = arith.constant 0 : index
    %c0_2 = arith.constant 0 : index
    %1 = vector.load %arg1[%c0_1, %c0_2] : memref<128x128xbf16, #tpu.memory_space<vmem>>, vector<128x128xbf16>
    %cst = arith.constant dense<0.000000e+00> : vector<8x128xf32>
    %2 = tpu.matmul %0, %1, %cst {dimension_numbers = #tpu.dot_dimension_numbers<[1], [0], [0], [1], [0, 0, 1, 1], [], []>} : vector<8x128xbf16>, vector<128x128xbf16>, vector<8x128xf32> -> vector<8x128xf32>
    %c0_3 = arith.constant 0 : index
    %c0_4 = arith.constant 0 : index
    %3 = vector.load %arg2[%c0_3, %c0_4] : memref<1x128xf32, #tpu.memory_space<vmem>>, vector<1x128xf32>
    %4 = vector.broadcast %3 : vector<1x128xf32> to vector<8x128xf32>
    %5 = arith.addf %2, %4 : vector<8x128xf32>
    %6 = arith.negf %5 : vector<8x128xf32>
    %7 = math.exp %6 : vector<8x128xf32>
    %cst_5 = arith.constant 1.000000e+00 : f32
    %8 = vector.broadcast %cst_5 : f32 to vector<8x128xf32>
    %9 = arith.addf %8, %7 : vector<8x128xf32>
    %10 = arith.divf %8, %9 : vector<8x128xf32>
    %11 = arith.truncf %10 : vector<8x128xf32> to vector<8x128xbf16>
    %c0_6 = arith.constant 0 : index
    %c0_7 = arith.constant 0 : index
    %12 = vector.load %arg3[%c0_6, %c0_7] : memref<128x512xbf16, #tpu.memory_space<vmem>>, vector<128x512xbf16>
    %cst_8 = arith.constant dense<0.000000e+00> : vector<8x512xf32>
    %13 = tpu.matmul %11, %12, %cst_8 {dimension_numbers = #tpu.dot_dimension_numbers<[1], [0], [0], [1], [0, 0, 1, 1], [], []>} : vector<8x128xbf16>, vector<128x512xbf16>, vector<8x512xf32> -> vector<8x512xf32>
    %c0_9 = arith.constant 0 : index
    %c0_10 = arith.constant 0 : index
    %14 = vector.load %arg5[%c0_9, %c0_10] : memref<1x512xf32, #tpu.memory_space<vmem>>, vector<1x512xf32>
    %15 = vector.broadcast %14 : vector<1x512xf32> to vector<8x512xf32>
    %16 = arith.addf %13, %15 : vector<8x512xf32>
    %c0_11 = arith.constant 0 : index
    %c0_12 = arith.constant 0 : index
    %17 = vector.load %arg13[%c0_11, %c0_12] : memref<8x512xf32, #tpu.memory_space<vmem>>, vector<8x512xf32>
    tpu.vector_store %arg13[%c0_11, %c0_12], %16 {strides = array<i32>} : memref<8x512xf32, #tpu.memory_space<vmem>>, vector<8x512xf32>,
    %c0_13 = arith.constant 0 : index
    %c0_14 = arith.constant 0 : index
    %18 = vector.load %arg8[%c0_13, %c0_14] : memref<1x128xf32, #tpu.memory_space<vmem>>, vector<1x128xf32>
    %c0_15 = arith.constant 0 : index
    %c0_16 = arith.constant 0 : index
    %19 = vector.load %arg9[%c0_15, %c0_16] : memref<1x128xf32, #tpu.memory_space<vmem>>, vector<1x128xf32>
    %c0_i32 = arith.constant 0 : i32
    %c8_i32 = arith.constant 8 : i32
    %20 = arith.muli %c0_i32, %c8_i32 : i32
    %21 = tpu.assume_multiple %20, 8 : i32
    %22 = arith.index_cast %21 : i32 to index
    %c0_17 = arith.constant 0 : index
    %23 = vector.load %arg13[%22, %c0_17] : memref<8x512xf32, #tpu.memory_space<vmem>>, vector<8x512xf32>
    %24 = vector.extract_strided_slice %23 {offsets = [0, 0], sizes = [1, 512], strides = [1, 1]} : vector<8x512xf32> to vector<1x512xf32>
    %25 = arith.truncf %18 : vector<1x128xf32> to vector<1x128xbf16>
    %c0_18 = arith.constant 0 : index
    %c0_19 = arith.constant 0 : index
    %26 = vector.load %arg4[%c0_18, %c0_19] : memref<128x512xbf16, #tpu.memory_space<vmem>>, vector<128x512xbf16>
    %cst_20 = arith.constant dense<0.000000e+00> : vector<1x512xf32>
    %27 = tpu.matmul %25, %26, %cst_20 {dimension_numbers = #tpu.dot_dimension_numbers<[1], [0], [0], [1], [0, 0, 1, 1], [], []>} : vector<1x128xbf16>, vector<128x512xbf16>, vector<1x512xf32> -> vector<1x512xf32>
    %28 = arith.addf %24, %27 : vector<1x512xf32>
    %29 = vector.extract_strided_slice %28 {offsets = [0, 0], sizes = [1, 128], strides = [1, 1]} : vector<1x512xf32> to vector<1x128xf32>
    %30 = arith.negf %29 : vector<1x128xf32>
    %31 = math.exp %30 : vector<1x128xf32>
    %cst_21 = arith.constant 1.000000e+00 : f32
    %32 = vector.broadcast %cst_21 : f32 to vector<1x128xf32>
    %33 = arith.addf %32, %31 : vector<1x128xf32>
    %34 = arith.divf %32, %33 : vector<1x128xf32>
    %35 = vector.extract_strided_slice %28 {offsets = [0, 128], sizes = [1, 128], strides = [1, 1]} : vector<1x512xf32> to vector<1x128xf32>
    %36 = arith.negf %35 : vector<1x128xf32>
    %37 = math.exp %36 : vector<1x128xf32>
    %cst_22 = arith.constant 1.000000e+00 : f32
    %38 = vector.broadcast %cst_22 : f32 to vector<1x128xf32>
    %39 = arith.addf %38, %37 : vector<1x128xf32>
    %40 = arith.divf %38, %39 : vector<1x128xf32>
    %41 = vector.extract_strided_slice %28 {offsets = [0, 256], sizes = [1, 128], strides = [1, 1]} : vector<1x512xf32> to vector<1x128xf32>
    %42 = math.tanh %41 : vector<1x128xf32>
    %43 = vector.extract_strided_slice %28 {offsets = [0, 384], sizes = [1, 128], strides = [1, 1]} : vector<1x512xf32> to vector<1x128xf32>
    %44 = arith.negf %43 : vector<1x128xf32>
    %45 = math.exp %44 : vector<1x128xf32>
    %cst_23 = arith.constant 1.000000e+00 : f32
    %46 = vector.broadcast %cst_23 : f32 to vector<1x128xf32>
    %47 = arith.addf %46, %45 : vector<1x128xf32>
    %48 = arith.divf %46, %47 : vector<1x128xf32>
    %49 = arith.mulf %40, %19 : vector<1x128xf32>
    %50 = arith.mulf %34, %42 : vector<1x128xf32>
    %51 = arith.addf %49, %50 : vector<1x128xf32>
    %52 = math.tanh %51 : vector<1x128xf32>
    %53 = arith.mulf %48, %52 : vector<1x128xf32>
    %54 = vector.extract_strided_slice %23 {offsets = [1, 0], sizes = [1, 512], strides = [1, 1]} : vector<8x512xf32> to vector<1x512xf32>
    %55 = arith.truncf %53 : vector<1x128xf32> to vector<1x128xbf16>
    %c0_24 = arith.constant 0 : index
    %c0_25 = arith.constant 0 : index
    %56 = vector.load %arg4[%c0_24, %c0_25] : memref<128x512xbf16, #tpu.memory_space<vmem>>, vector<128x512xbf16>
    %cst_26 = arith.constant dense<0.000000e+00> : vector<1x512xf32>
    %57 = tpu.matmul %55, %56, %cst_26 {dimension_numbers = #tpu.dot_dimension_numbers<[1], [0], [0], [1], [0, 0, 1, 1], [], []>} : vector<1x128xbf16>, vector<128x512xbf16>, vector<1x512xf32> -> vector<1x512xf32>
    %58 = arith.addf %54, %57 : vector<1x512xf32>
    %59 = vector.extract_strided_slice %58 {offsets = [0, 0], sizes = [1, 128], strides = [1, 1]} : vector<1x512xf32> to vector<1x128xf32>
    %60 = arith.negf %59 : vector<1x128xf32>
    %61 = math.exp %60 : vector<1x128xf32>
    %cst_27 = arith.constant 1.000000e+00 : f32
    %62 = vector.broadcast %cst_27 : f32 to vector<1x128xf32>
    %63 = arith.addf %62, %61 : vector<1x128xf32>
    %64 = arith.divf %62, %63 : vector<1x128xf32>
    %65 = vector.extract_strided_slice %58 {offsets = [0, 128], sizes = [1, 128], strides = [1, 1]} : vector<1x512xf32> to vector<1x128xf32>
    %66 = arith.negf %65 : vector<1x128xf32>
    %67 = math.exp %66 : vector<1x128xf32>
    %cst_28 = arith.constant 1.000000e+00 : f32
    %68 = vector.broadcast %cst_28 : f32 to vector<1x128xf32>
    %69 = arith.addf %68, %67 : vector<1x128xf32>
    %70 = arith.divf %68, %69 : vector<1x128xf32>
    %71 = vector.extract_strided_slice %58 {offsets = [0, 256], sizes = [1, 128], strides = [1, 1]} : vector<1x512xf32> to vector<1x128xf32>
    %72 = math.tanh %71 : vector<1x128xf32>
    %73 = vector.extract_strided_slice %58 {offsets = [0, 384], sizes = [1, 128], strides = [1, 1]} : vector<1x512xf32> to vector<1x128xf32>
    %74 = arith.negf %73 : vector<1x128xf32>
    %75 = math.exp %74 : vector<1x128xf32>
    %cst_29 = arith.constant 1.000000e+00 : f32
    %76 = vector.broadcast %cst_29 : f32 to vector<1x128xf32>
    %77 = arith.addf %76, %75 : vector<1x128xf32>
    %78 = arith.divf %76, %77 : vector<1x128xf32>
    %79 = arith.mulf %70, %51 : vector<1x128xf32>
    %80 = arith.mulf %64, %72 : vector<1x128xf32>
    %81 = arith.addf %79, %80 : vector<1x128xf32>
    %82 = math.tanh %81 : vector<1x128xf32>
    %83 = arith.mulf %78, %82 : vector<1x128xf32>
    %84 = vector.extract_strided_slice %23 {offsets = [2, 0], sizes = [1, 512], strides = [1, 1]} : vector<8x512xf32> to vector<1x512xf32>
    %85 = arith.truncf %83 : vector<1x128xf32> to vector<1x128xbf16>
    %c0_30 = arith.constant 0 : index
    %c0_31 = arith.constant 0 : index
    %86 = vector.load %arg4[%c0_30, %c0_31] : memref<128x512xbf16, #tpu.memory_space<vmem>>, vector<128x512xbf16>
    %cst_32 = arith.constant dense<0.000000e+00> : vector<1x512xf32>
    %87 = tpu.matmul %85, %86, %cst_32 {dimension_numbers = #tpu.dot_dimension_numbers<[1], [0], [0], [1], [0, 0, 1, 1], [], []>} : vector<1x128xbf16>, vector<128x512xbf16>, vector<1x512xf32> -> vector<1x512xf32>
    %88 = arith.addf %84, %87 : vector<1x512xf32>
    %89 = vector.extract_strided_slice %88 {offsets = [0, 0], sizes = [1, 128], strides = [1, 1]} : vector<1x512xf32> to vector<1x128xf32>
    %90 = arith.negf %89 : vector<1x128xf32>
    %91 = math.exp %90 : vector<1x128xf32>
    %cst_33 = arith.constant 1.000000e+00 : f32
    %92 = vector.broadcast %cst_33 : f32 to vector<1x128xf32>
    %93 = arith.addf %92, %91 : vector<1x128xf32>
    %94 = arith.divf %92, %93 : vector<1x128xf32>
    %95 = vector.extract_strided_slice %88 {offsets = [0, 128], sizes = [1, 128], strides = [1, 1]} : vector<1x512xf32> to vector<1x128xf32>
    %96 = arith.negf %95 : vector<1x128xf32>
    %97 = math.exp %96 : vector<1x128xf32>
    %cst_34 = arith.constant 1.000000e+00 : f32
    %98 = vector.broadcast %cst_34 : f32 to vector<1x128xf32>
    %99 = arith.addf %98, %97 : vector<1x128xf32>
    %100 = arith.divf %98, %99 : vector<1x128xf32>
    %101 = vector.extract_strided_slice %88 {offsets = [0, 256], sizes = [1, 128], strides = [1, 1]} : vector<1x512xf32> to vector<1x128xf32>
    %102 = math.tanh %101 : vector<1x128xf32>
    %103 = vector.extract_strided_slice %88 {offsets = [0, 384], sizes = [1, 128], strides = [1, 1]} : vector<1x512xf32> to vector<1x128xf32>
    %104 = arith.negf %103 : vector<1x128xf32>
    %105 = math.exp %104 : vector<1x128xf32>
    %cst_35 = arith.constant 1.000000e+00 : f32
    %106 = vector.broadcast %cst_35 : f32 to vector<1x128xf32>
    %107 = arith.addf %106, %105 : vector<1x128xf32>
    %108 = arith.divf %106, %107 : vector<1x128xf32>
    %109 = arith.mulf %100, %81 : vector<1x128xf32>
    %110 = arith.mulf %94, %102 : vector<1x128xf32>
    %111 = arith.addf %109, %110 : vector<1x128xf32>
    %112 = math.tanh %111 : vector<1x128xf32>
    %113 = arith.mulf %108, %112 : vector<1x128xf32>
    %114 = vector.extract_strided_slice %23 {offsets = [3, 0], sizes = [1, 512], strides = [1, 1]} : vector<8x512xf32> to vector<1x512xf32>
    %115 = arith.truncf %113 : vector<1x128xf32> to vector<1x128xbf16>
    %c0_36 = arith.constant 0 : index
    %c0_37 = arith.constant 0 : index
    %116 = vector.load %arg4[%c0_36, %c0_37] : memref<128x512xbf16, #tpu.memory_space<vmem>>, vector<128x512xbf16>
    %cst_38 = arith.constant dense<0.000000e+00> : vector<1x512xf32>
    %117 = tpu.matmul %115, %116, %cst_38 {dimension_numbers = #tpu.dot_dimension_numbers<[1], [0], [0], [1], [0, 0, 1, 1], [], []>} : vector<1x128xbf16>, vector<128x512xbf16>, vector<1x512xf32> -> vector<1x512xf32>
    %118 = arith.addf %114, %117 : vector<1x512xf32>
    %119 = vector.extract_strided_slice %118 {offsets = [0, 0], sizes = [1, 128], strides = [1, 1]} : vector<1x512xf32> to vector<1x128xf32>
    %120 = arith.negf %119 : vector<1x128xf32>
    %121 = math.exp %120 : vector<1x128xf32>
    %cst_39 = arith.constant 1.000000e+00 : f32
    %122 = vector.broadcast %cst_39 : f32 to vector<1x128xf32>
    %123 = arith.addf %122, %121 : vector<1x128xf32>
    %124 = arith.divf %122, %123 : vector<1x128xf32>
    %125 = vector.extract_strided_slice %118 {offsets = [0, 128], sizes = [1, 128], strides = [1, 1]} : vector<1x512xf32> to vector<1x128xf32>
    %126 = arith.negf %125 : vector<1x128xf32>
    %127 = math.exp %126 : vector<1x128xf32>
    %cst_40 = arith.constant 1.000000e+00 : f32
    %128 = vector.broadcast %cst_40 : f32 to vector<1x128xf32>
    %129 = arith.addf %128, %127 : vector<1x128xf32>
    %130 = arith.divf %128, %129 : vector<1x128xf32>
    %131 = vector.extract_strided_slice %118 {offsets = [0, 256], sizes = [1, 128], strides = [1, 1]} : vector<1x512xf32> to vector<1x128xf32>
    %132 = math.tanh %131 : vector<1x128xf32>
    %133 = vector.extract_strided_slice %118 {offsets = [0, 384], sizes = [1, 128], strides = [1, 1]} : vector<1x512xf32> to vector<1x128xf32>
    %134 = arith.negf %133 : vector<1x128xf32>
    %135 = math.exp %134 : vector<1x128xf32>
    %cst_41 = arith.constant 1.000000e+00 : f32
    %136 = vector.broadcast %cst_41 : f32 to vector<1x128xf32>
    %137 = arith.addf %136, %135 : vector<1x128xf32>
    %138 = arith.divf %136, %137 : vector<1x128xf32>
    %139 = arith.mulf %130, %111 : vector<1x128xf32>
    %140 = arith.mulf %124, %132 : vector<1x128xf32>
    %141 = arith.addf %139, %140 : vector<1x128xf32>
    %142 = math.tanh %141 : vector<1x128xf32>
    %143 = arith.mulf %138, %142 : vector<1x128xf32>
    %144 = vector.extract_strided_slice %23 {offsets = [4, 0], sizes = [1, 512], strides = [1, 1]} : vector<8x512xf32> to vector<1x512xf32>
    %145 = arith.truncf %143 : vector<1x128xf32> to vector<1x128xbf16>
    %c0_42 = arith.constant 0 : index
    %c0_43 = arith.constant 0 : index
    %146 = vector.load %arg4[%c0_42, %c0_43] : memref<128x512xbf16, #tpu.memory_space<vmem>>, vector<128x512xbf16>
    %cst_44 = arith.constant dense<0.000000e+00> : vector<1x512xf32>
    %147 = tpu.matmul %145, %146, %cst_44 {dimension_numbers = #tpu.dot_dimension_numbers<[1], [0], [0], [1], [0, 0, 1, 1], [], []>} : vector<1x128xbf16>, vector<128x512xbf16>, vector<1x512xf32> -> vector<1x512xf32>
    %148 = arith.addf %144, %147 : vector<1x512xf32>
    %149 = vector.extract_strided_slice %148 {offsets = [0, 0], sizes = [1, 128], strides = [1, 1]} : vector<1x512xf32> to vector<1x128xf32>
    %150 = arith.negf %149 : vector<1x128xf32>
    %151 = math.exp %150 : vector<1x128xf32>
    %cst_45 = arith.constant 1.000000e+00 : f32
    %152 = vector.broadcast %cst_45 : f32 to vector<1x128xf32>
    %153 = arith.addf %152, %151 : vector<1x128xf32>
    %154 = arith.divf %152, %153 : vector<1x128xf32>
    %155 = vector.extract_strided_slice %148 {offsets = [0, 128], sizes = [1, 128], strides = [1, 1]} : vector<1x512xf32> to vector<1x128xf32>
    %156 = arith.negf %155 : vector<1x128xf32>
    %157 = math.exp %156 : vector<1x128xf32>
    %cst_46 = arith.constant 1.000000e+00 : f32
    %158 = vector.broadcast %cst_46 : f32 to vector<1x128xf32>
    %159 = arith.addf %158, %157 : vector<1x128xf32>
    %160 = arith.divf %158, %159 : vector<1x128xf32>
    %161 = vector.extract_strided_slice %148 {offsets = [0, 256], sizes = [1, 128], strides = [1, 1]} : vector<1x512xf32> to vector<1x128xf32>
    %162 = math.tanh %161 : vector<1x128xf32>
    %163 = vector.extract_strided_slice %148 {offsets = [0, 384], sizes = [1, 128], strides = [1, 1]} : vector<1x512xf32> to vector<1x128xf32>
    %164 = arith.negf %163 : vector<1x128xf32>
    %165 = math.exp %164 : vector<1x128xf32>
    %cst_47 = arith.constant 1.000000e+00 : f32
    %166 = vector.broadcast %cst_47 : f32 to vector<1x128xf32>
    %167 = arith.addf %166, %165 : vector<1x128xf32>
    %168 = arith.divf %166, %167 : vector<1x128xf32>
    %169 = arith.mulf %160, %141 : vector<1x128xf32>
    %170 = arith.mulf %154, %162 : vector<1x128xf32>
    %171 = arith.addf %169, %170 : vector<1x128xf32>
    %172 = math.tanh %171 : vector<1x128xf32>
    %173 = arith.mulf %168, %172 : vector<1x128xf32>
    %174 = vector.extract_strided_slice %23 {offsets = [5, 0], sizes = [1, 512], strides = [1, 1]} : vector<8x512xf32> to vector<1x512xf32>
    %175 = arith.truncf %173 : vector<1x128xf32> to vector<1x128xbf16>
    %c0_48 = arith.constant 0 : index
    %c0_49 = arith.constant 0 : index
    %176 = vector.load %arg4[%c0_48, %c0_49] : memref<128x512xbf16, #tpu.memory_space<vmem>>, vector<128x512xbf16>
    %cst_50 = arith.constant dense<0.000000e+00> : vector<1x512xf32>
    %177 = tpu.matmul %175, %176, %cst_50 {dimension_numbers = #tpu.dot_dimension_numbers<[1], [0], [0], [1], [0, 0, 1, 1], [], []>} : vector<1x128xbf16>, vector<128x512xbf16>, vector<1x512xf32> -> vector<1x512xf32>
    %178 = arith.addf %174, %177 : vector<1x512xf32>
    %179 = vector.extract_strided_slice %178 {offsets = [0, 0], sizes = [1, 128], strides = [1, 1]} : vector<1x512xf32> to vector<1x128xf32>
    %180 = arith.negf %179 : vector<1x128xf32>
    %181 = math.exp %180 : vector<1x128xf32>
    %cst_51 = arith.constant 1.000000e+00 : f32
    %182 = vector.broadcast %cst_51 : f32 to vector<1x128xf32>
    %183 = arith.addf %182, %181 : vector<1x128xf32>
    %184 = arith.divf %182, %183 : vector<1x128xf32>
    %185 = vector.extract_strided_slice %178 {offsets = [0, 128], sizes = [1, 128], strides = [1, 1]} : vector<1x512xf32> to vector<1x128xf32>
    %186 = arith.negf %185 : vector<1x128xf32>
    %187 = math.exp %186 : vector<1x128xf32>
    %cst_52 = arith.constant 1.000000e+00 : f32
    %188 = vector.broadcast %cst_52 : f32 to vector<1x128xf32>
    %189 = arith.addf %188, %187 : vector<1x128xf32>
    %190 = arith.divf %188, %189 : vector<1x128xf32>
    %191 = vector.extract_strided_slice %178 {offsets = [0, 256], sizes = [1, 128], strides = [1, 1]} : vector<1x512xf32> to vector<1x128xf32>
    %192 = math.tanh %191 : vector<1x128xf32>
    %193 = vector.extract_strided_slice %178 {offsets = [0, 384], sizes = [1, 128], strides = [1, 1]} : vector<1x512xf32> to vector<1x128xf32>
    %194 = arith.negf %193 : vector<1x128xf32>
    %195 = math.exp %194 : vector<1x128xf32>
    %cst_53 = arith.constant 1.000000e+00 : f32
    %196 = vector.broadcast %cst_53 : f32 to vector<1x128xf32>
    %197 = arith.addf %196, %195 : vector<1x128xf32>
    %198 = arith.divf %196, %197 : vector<1x128xf32>
    %199 = arith.mulf %190, %171 : vector<1x128xf32>
    %200 = arith.mulf %184, %192 : vector<1x128xf32>
    %201 = arith.addf %199, %200 : vector<1x128xf32>
    %202 = math.tanh %201 : vector<1x128xf32>
    %203 = arith.mulf %198, %202 : vector<1x128xf32>
    %204 = vector.extract_strided_slice %23 {offsets = [6, 0], sizes = [1, 512], strides = [1, 1]} : vector<8x512xf32> to vector<1x512xf32>
    %205 = arith.truncf %203 : vector<1x128xf32> to vector<1x128xbf16>
    %c0_54 = arith.constant 0 : index
    %c0_55 = arith.constant 0 : index
    %206 = vector.load %arg4[%c0_54, %c0_55] : memref<128x512xbf16, #tpu.memory_space<vmem>>, vector<128x512xbf16>
    %cst_56 = arith.constant dense<0.000000e+00> : vector<1x512xf32>
    %207 = tpu.matmul %205, %206, %cst_56 {dimension_numbers = #tpu.dot_dimension_numbers<[1], [0], [0], [1], [0, 0, 1, 1], [], []>} : vector<1x128xbf16>, vector<128x512xbf16>, vector<1x512xf32> -> vector<1x512xf32>
    %208 = arith.addf %204, %207 : vector<1x512xf32>
    %209 = vector.extract_strided_slice %208 {offsets = [0, 0], sizes = [1, 128], strides = [1, 1]} : vector<1x512xf32> to vector<1x128xf32>
    %210 = arith.negf %209 : vector<1x128xf32>
    %211 = math.exp %210 : vector<1x128xf32>
    %cst_57 = arith.constant 1.000000e+00 : f32
    %212 = vector.broadcast %cst_57 : f32 to vector<1x128xf32>
    %213 = arith.addf %212, %211 : vector<1x128xf32>
    %214 = arith.divf %212, %213 : vector<1x128xf32>
    %215 = vector.extract_strided_slice %208 {offsets = [0, 128], sizes = [1, 128], strides = [1, 1]} : vector<1x512xf32> to vector<1x128xf32>
    %216 = arith.negf %215 : vector<1x128xf32>
    %217 = math.exp %216 : vector<1x128xf32>
    %cst_58 = arith.constant 1.000000e+00 : f32
    %218 = vector.broadcast %cst_58 : f32 to vector<1x128xf32>
    %219 = arith.addf %218, %217 : vector<1x128xf32>
    %220 = arith.divf %218, %219 : vector<1x128xf32>
    %221 = vector.extract_strided_slice %208 {offsets = [0, 256], sizes = [1, 128], strides = [1, 1]} : vector<1x512xf32> to vector<1x128xf32>
    %222 = math.tanh %221 : vector<1x128xf32>
    %223 = vector.extract_strided_slice %208 {offsets = [0, 384], sizes = [1, 128], strides = [1, 1]} : vector<1x512xf32> to vector<1x128xf32>
    %224 = arith.negf %223 : vector<1x128xf32>
    %225 = math.exp %224 : vector<1x128xf32>
    %cst_59 = arith.constant 1.000000e+00 : f32
    %226 = vector.broadcast %cst_59 : f32 to vector<1x128xf32>
    %227 = arith.addf %226, %225 : vector<1x128xf32>
    %228 = arith.divf %226, %227 : vector<1x128xf32>
    %229 = arith.mulf %220, %201 : vector<1x128xf32>
    %230 = arith.mulf %214, %222 : vector<1x128xf32>
    %231 = arith.addf %229, %230 : vector<1x128xf32>
    %232 = math.tanh %231 : vector<1x128xf32>
    %233 = arith.mulf %228, %232 : vector<1x128xf32>
    %234 = vector.extract_strided_slice %23 {offsets = [7, 0], sizes = [1, 512], strides = [1, 1]} : vector<8x512xf32> to vector<1x512xf32>
    %235 = arith.truncf %233 : vector<1x128xf32> to vector<1x128xbf16>
    %c0_60 = arith.constant 0 : index
    %c0_61 = arith.constant 0 : index
    %236 = vector.load %arg4[%c0_60, %c0_61] : memref<128x512xbf16, #tpu.memory_space<vmem>>, vector<128x512xbf16>
    %cst_62 = arith.constant dense<0.000000e+00> : vector<1x512xf32>
    %237 = tpu.matmul %235, %236, %cst_62 {dimension_numbers = #tpu.dot_dimension_numbers<[1], [0], [0], [1], [0, 0, 1, 1], [], []>} : vector<1x128xbf16>, vector<128x512xbf16>, vector<1x512xf32> -> vector<1x512xf32>
    %238 = arith.addf %234, %237 : vector<1x512xf32>
    %239 = vector.extract_strided_slice %238 {offsets = [0, 0], sizes = [1, 128], strides = [1, 1]} : vector<1x512xf32> to vector<1x128xf32>
    %240 = arith.negf %239 : vector<1x128xf32>
    %241 = math.exp %240 : vector<1x128xf32>
    %cst_63 = arith.constant 1.000000e+00 : f32
    %242 = vector.broadcast %cst_63 : f32 to vector<1x128xf32>
    %243 = arith.addf %242, %241 : vector<1x128xf32>
    %244 = arith.divf %242, %243 : vector<1x128xf32>
    %245 = vector.extract_strided_slice %238 {offsets = [0, 128], sizes = [1, 128], strides = [1, 1]} : vector<1x512xf32> to vector<1x128xf32>
    %246 = arith.negf %245 : vector<1x128xf32>
    %247 = math.exp %246 : vector<1x128xf32>
    %cst_64 = arith.constant 1.000000e+00 : f32
    %248 = vector.broadcast %cst_64 : f32 to vector<1x128xf32>
    %249 = arith.addf %248, %247 : vector<1x128xf32>
    %250 = arith.divf %248, %249 : vector<1x128xf32>
    %251 = vector.extract_strided_slice %238 {offsets = [0, 256], sizes = [1, 128], strides = [1, 1]} : vector<1x512xf32> to vector<1x128xf32>
    %252 = math.tanh %251 : vector<1x128xf32>
    %253 = vector.extract_strided_slice %238 {offsets = [0, 384], sizes = [1, 128], strides = [1, 1]} : vector<1x512xf32> to vector<1x128xf32>
    %254 = arith.negf %253 : vector<1x128xf32>
    %255 = math.exp %254 : vector<1x128xf32>
    %cst_65 = arith.constant 1.000000e+00 : f32
    %256 = vector.broadcast %cst_65 : f32 to vector<1x128xf32>
    %257 = arith.addf %256, %255 : vector<1x128xf32>
    %258 = arith.divf %256, %257 : vector<1x128xf32>
    %259 = arith.mulf %250, %231 : vector<1x128xf32>
    %260 = arith.mulf %244, %252 : vector<1x128xf32>
    %261 = arith.addf %259, %260 : vector<1x128xf32>
    %262 = math.tanh %261 : vector<1x128xf32>
    %263 = arith.mulf %258, %262 : vector<1x128xf32>
    %264 = tpu.concatenate %53, %83, %113, %143, %173, %203, %233, %263 in 0 : vector<1x128xf32>, vector<1x128xf32>, vector<1x128xf32>, vector<1x128xf32>, vector<1x128xf32>, vector<1x128xf32>, vector<1x128xf32>, vector<1x128xf32> -> vector<8x128xf32>
    %265 = arith.index_cast %21 : i32 to index
    %c0_66 = arith.constant 0 : index
    %266 = vector.load %arg14[%265, %c0_66] : memref<8x128xf32, #tpu.memory_space<vmem>>, vector<8x128xf32>
    tpu.vector_store %arg14[%265, %c0_66], %264 {strides = array<i32>} : memref<8x128xf32, #tpu.memory_space<vmem>>, vector<8x128xf32>,
    %267 = tpu.concatenate %51, %81, %111, %141, %171, %201, %231, %261 in 0 : vector<1x128xf32>, vector<1x128xf32>, vector<1x128xf32>, vector<1x128xf32>, vector<1x128xf32>, vector<1x128xf32>, vector<1x128xf32>, vector<1x128xf32> -> vector<8x128xf32>
    %268 = arith.index_cast %21 : i32 to index
    %c0_67 = arith.constant 0 : index
    %269 = vector.load %arg15[%268, %c0_67] : memref<8x128xf32, #tpu.memory_space<vmem>>, vector<8x128xf32>
    tpu.vector_store %arg15[%268, %c0_67], %267 {strides = array<i32>} : memref<8x128xf32, #tpu.memory_space<vmem>>, vector<8x128xf32>,
    %c1_i32 = arith.constant 1 : i32
    %c7 = arith.constant 7 : index
    %c0_68 = arith.constant 0 : index
    %270 = vector.load %arg14[%c7, %c0_68] : memref<8x128xf32, #tpu.memory_space<vmem>>, vector<1x128xf32>
    %c0_69 = arith.constant 0 : index
    %c0_70 = arith.constant 0 : index
    %271 = vector.load %arg11[%c0_69, %c0_70] : memref<1x128xf32, #tpu.memory_space<vmem>>, vector<1x128xf32>
    tpu.vector_store %arg11[%c0_69, %c0_70], %270 {strides = array<i32>} : memref<1x128xf32, #tpu.memory_space<vmem>>, vector<1x128xf32>,
    %c7_71 = arith.constant 7 : index
    %c0_72 = arith.constant 0 : index
    %272 = vector.load %arg15[%c7_71, %c0_72] : memref<8x128xf32, #tpu.memory_space<vmem>>, vector<1x128xf32>
    %c0_73 = arith.constant 0 : index
    %c0_74 = arith.constant 0 : index
    %273 = vector.load %arg12[%c0_73, %c0_74] : memref<1x128xf32, #tpu.memory_space<vmem>>, vector<1x128xf32>
    tpu.vector_store %arg12[%c0_73, %c0_74], %272 {strides = array<i32>} : memref<1x128xf32, #tpu.memory_space<vmem>>, vector<1x128xf32>,
    %c0_75 = arith.constant 0 : index
    %c0_76 = arith.constant 0 : index
    %274 = vector.load %arg14[%c0_75, %c0_76] : memref<8x128xf32, #tpu.memory_space<vmem>>, vector<8x128xf32>
    %275 = arith.negf %274 : vector<8x128xf32>
    %276 = math.exp %275 : vector<8x128xf32>
    %cst_77 = arith.constant 1.000000e+00 : f32
    %277 = vector.broadcast %cst_77 : f32 to vector<8x128xf32>
    %278 = arith.addf %277, %276 : vector<8x128xf32>
    %279 = arith.divf %277, %278 : vector<8x128xf32>
    %280 = arith.truncf %279 : vector<8x128xf32> to vector<8x128xbf16>
    %c0_78 = arith.constant 0 : index
    %c0_79 = arith.constant 0 : index
    %281 = vector.load %arg6[%c0_78, %c0_79] : memref<128x128xbf16, #tpu.memory_space<vmem>>, vector<128x128xbf16>
    %cst_80 = arith.constant dense<0.000000e+00> : vector<8x128xf32>
    %282 = tpu.matmul %280, %281, %cst_80 {dimension_numbers = #tpu.dot_dimension_numbers<[1], [0], [0], [1], [0, 0, 1, 1], [], []>} : vector<8x128xbf16>, vector<128x128xbf16>, vector<8x128xf32> -> vector<8x128xf32>
    %c0_81 = arith.constant 0 : index
    %c0_82 = arith.constant 0 : index
    %283 = vector.load %arg7[%c0_81, %c0_82] : memref<1x128xf32, #tpu.memory_space<vmem>>, vector<1x128xf32>
    %284 = vector.broadcast %283 : vector<1x128xf32> to vector<8x128xf32>
    %285 = arith.addf %282, %284 : vector<8x128xf32>
    %c0_83 = arith.constant 0 : index
    %c0_84 = arith.constant 0 : index
    %286 = vector.load %arg10[%c0_83, %c0_84] : memref<8x128xf32, #tpu.memory_space<vmem>>, vector<8x128xf32>
    tpu.vector_store %arg10[%c0_83, %c0_84], %285 {strides = array<i32>} : memref<8x128xf32, #tpu.memory_space<vmem>>, vector<8x128xf32>,
    return
  }
}

</mosaic_0001>

<llo_original>
// kernel: tpu_custom_call.1
$region0: #{tpu_custom_call.1}
  #allocation0 [shape = 'u32[]', space=smem, size = 0x4, offset = 0x4, fixed_abs, tag = 'smem constant byte address 0x4 - core index']
  #allocation1 [shape = 'u32[144,128]{1,0:T(1,128)}', space=vmem, size = 0x12000, scoped, tag = 'internal scratch']
  #allocation2 [shape = 'f32[8,512]{1,0:T(8,128)}', space=vmem, size = 0x4000, scoped, tag = 'scratch operand']
  #allocation3 [shape = 'f32[8,128]{1,0:T(8,128)}', space=vmem, size = 0x1000, scoped, tag = 'scratch operand']
  #allocation4 [shape = 'f32[8,128]{1,0:T(8,128)}', space=vmem, size = 0x1000, scoped, tag = 'scratch operand']
  %s0 = inlined_call_operand.hbm [shape: bf16[8,128], index: 0, kind: input, shape index: {}]
  %s1 = inlined_call_operand.hbm [shape: bf16[128,128], index: 1, kind: input, shape index: {}]
  %s2 = inlined_call_operand.vmem [shape: f32[1,128], index: 2, kind: input, shape index: {}]
  %s3 = inlined_call_operand.hbm [shape: bf16[128,512], index: 3, kind: input, shape index: {}]
  %s4 = inlined_call_operand.hbm [shape: bf16[128,512], index: 4, kind: input, shape index: {}]
  %s5 = inlined_call_operand.vmem [shape: f32[1,512], index: 5, kind: input, shape index: {}]
  %s6 = inlined_call_operand.hbm [shape: bf16[128,128], index: 6, kind: input, shape index: {}]
  %s7 = inlined_call_operand.vmem [shape: f32[1,128], index: 7, kind: input, shape index: {}]
  %s8 = inlined_call_operand.vmem [shape: f32[1,128], index: 8, kind: input, shape index: {}]
  %s9 = inlined_call_operand.vmem [shape: f32[1,128], index: 9, kind: input, shape index: {}]
  %s10 = inlined_call_operand.hbm [shape: f32[8,128], index: 10, kind: output, shape index: {0}]
  %s11 = inlined_call_operand.hbm [shape: f32[1,128], index: 11, kind: output, shape index: {1}]
  %s12 = inlined_call_operand.hbm [shape: f32[1,128], index: 12, kind: output, shape index: {2}]
  %13 = xla_tuple %s10, %s11, %s12
  %s14 = sld [smem:[#allocation0]]
  $region86: #{tpu_custom_call.1} parent=0
    _
  %s16 = ssub.s32 1, %s14
  %s17 = scalar_select 0, %s16, %s14
  $region1: #{tpu_custom_call.1} parent=0
    #allocation5 [shape = 'u8[2048]{0}', space=vmem, size = 0x800, scoped, tag = 'input window, operand 0, single buffered']
    #allocation6 [shape = 's32[1]{0}', space=sflag, size = 0x4, scoped, tag = 'scoped memory for tpu_custom_call.1']
    #allocation7 [shape = 's32[1]{0}', space=sflag, size = 0x4, scoped, tag = 'scoped memory for tpu_custom_call.1']
    #allocation8 [shape = 'u8[32768]{0}', space=vmem, size = 0x8000, scoped, tag = 'input window, operand 1, single buffered']
    #allocation9 [shape = 's32[1]{0}', space=sflag, size = 0x4, scoped, tag = 'scoped memory for tpu_custom_call.1']
    #allocation10 [shape = 'u8[131072]{0}', space=vmem, size = 0x20000, scoped, tag = 'input window, operand 3, single buffered']
    #allocation11 [shape = 'u8[131072]{0}', space=vmem, size = 0x20000, scoped, tag = 'input window, operand 4, single buffered']
    #allocation12 [shape = 's32[1]{0}', space=sflag, size = 0x4, scoped, tag = 'scoped memory for tpu_custom_call.1']
    #allocation13 [shape = 'u8[32768]{0}', space=vmem, size = 0x8000, scoped, tag = 'input window, operand 6, single buffered']
    #allocation14 [shape = 'u8[4096]{0}', space=vmem, size = 0x1000, scoped, tag = 'output window, operand 0, single buffered']
    #allocation15 [shape = 'u8[512]{0}', space=vmem, size = 0x400, scoped, tag = 'output window, operand 1, single buffered']
    #allocation16 [shape = 's32[1]{0}', space=sflag, size = 0x4, scoped, tag = 'scoped memory for tpu_custom_call.1']
    #allocation17 [shape = 'u8[512]{0}', space=vmem, size = 0x400, scoped, tag = 'output window, operand 2, single buffered']
    %18 = vsyncpa [#allocation6], 0
    %19 = vsyncpa [#allocation9], 0
    %20 = vsyncpa [#allocation12], 0
    %21 = vsyncpa [#allocation7], 0
    %22 = vsyncpa [#allocation16], 0
    // Predicated region
    $region2: #{tpu_custom_call.1} parent=1 // pred_check
      _
    $region3: #{tpu_custom_call.1} parent=1 // pred_check_branch
      %24 = sbr.rel (0) target = $region5
    $region4: #{tpu_custom_call.1} parent=1 // pred_region
      %s26 = ssub.s32 64, 64
      %27 = vsyncadd [#allocation6], %s26
      %s29 = sshll.u32 [#allocation5], 4
      %s30 = int_to_ptr.vmem [resolvable:$true] %s29
      %32 = dma.hbm_to_vmem [thread:$0]  %s0, 64, %s30, [#allocation6]
    $region5: #{tpu_custom_call.1} parent=1 // pred_fallthru
      _
    // Predicated region
    $region6: #{tpu_custom_call.1} parent=1 // pred_check
      _
    $region7: #{tpu_custom_call.1} parent=1 // pred_check_branch
      %34 = sbr.rel (0) target = $region9
    $region8: #{tpu_custom_call.1} parent=1 // pred_region
      %s36 = ssub.s32 1024, 1024
      %37 = vsyncadd [#allocation9], %s36
      %s38 = sshll.u32 [#allocation8], 4
      %s39 = int_to_ptr.vmem [resolvable:$true] %s38
      %44 = dma.hbm_to_vmem [thread:$0]  %s1, 1024, %s39, [#allocation9], 64, 64, 4
    $region9: #{tpu_custom_call.1} parent=1 // pred_fallthru
      _
    // Predicated region
    $region10: #{tpu_custom_call.1} parent=1 // pred_check
      _
    $region11: #{tpu_custom_call.1} parent=1 // pred_check_branch
      %46 = sbr.rel (0) target = $region13
    $region12: #{tpu_custom_call.1} parent=1 // pred_region
      _
    $region13: #{tpu_custom_call.1} parent=1 // pred_fallthru
      _
    // Predicated region
    $region14: #{tpu_custom_call.1} parent=1 // pred_check
      _
    $region15: #{tpu_custom_call.1} parent=1 // pred_check_branch
      %48 = sbr.rel (0) target = $region17
    $region16: #{tpu_custom_call.1} parent=1 // pred_region
      %s50 = ssub.s32 4096, 4096
      %51 = vsyncadd [#allocation9], %s50
      %s52 = sshll.u32 [#allocation10], 4
      %s53 = int_to_ptr.vmem [resolvable:$true] %s52
      %58 = dma.hbm_to_vmem [thread:$0]  %s3, 4096, %s53, [#allocation9], 256, 256, 16
    $region17: #{tpu_custom_call.1} parent=1 // pred_fallthru
      _
    // Predicated region
    $region18: #{tpu_custom_call.1} parent=1 // pred_check
      _
    $region19: #{tpu_custom_call.1} parent=1 // pred_check_branch
      %60 = sbr.rel (0) target = $region21
    $region20: #{tpu_custom_call.1} parent=1 // pred_region
      %s62 = ssub.s32 4096, 4096
      %63 = vsyncadd [#allocation12], %s62
      %s64 = sshll.u32 [#allocation11], 4
      %s65 = int_to_ptr.vmem [resolvable:$true] %s64
      %70 = dma.hbm_to_vmem [thread:$0]  %s4, 4096, %s65, [#allocation12], 256, 256, 16
    $region21: #{tpu_custom_call.1} parent=1 // pred_fallthru
      _
    // Predicated region
    $region22: #{tpu_custom_call.1} parent=1 // pred_check
      _
    $region23: #{tpu_custom_call.1} parent=1 // pred_check_branch
      %72 = sbr.rel (0) target = $region25
    $region24: #{tpu_custom_call.1} parent=1 // pred_region
      _
    $region25: #{tpu_custom_call.1} parent=1 // pred_fallthru
      _
    // Predicated region
    $region26: #{tpu_custom_call.1} parent=1 // pred_check
      _
    $region27: #{tpu_custom_call.1} parent=1 // pred_check_branch
      %74 = sbr.rel (0) target = $region29
    $region28: #{tpu_custom_call.1} parent=1 // pred_region
      %s76 = ssub.s32 1024, 1024
      %77 = vsyncadd [#allocation12], %s76
      %s78 = sshll.u32 [#allocation13], 4
      %s79 = int_to_ptr.vmem [resolvable:$true] %s78
      %84 = dma.hbm_to_vmem [thread:$0]  %s6, 1024, %s79, [#allocation12], 64, 64, 4
    $region29: #{tpu_custom_call.1} parent=1 // pred_fallthru
      _
    // Predicated region
    $region30: #{tpu_custom_call.1} parent=1 // pred_check
      _
    $region31: #{tpu_custom_call.1} parent=1 // pred_check_branch
      %86 = sbr.rel (0) target = $region33
    $region32: #{tpu_custom_call.1} parent=1 // pred_region
      _
    $region33: #{tpu_custom_call.1} parent=1 // pred_fallthru
      _
    // Predicated region
    $region34: #{tpu_custom_call.1} parent=1 // pred_check
      _
    $region35: #{tpu_custom_call.1} parent=1 // pred_check_branch
      %88 = sbr.rel (0) target = $region37
    $region36: #{tpu_custom_call.1} parent=1 // pred_region
      _
    $region37: #{tpu_custom_call.1} parent=1 // pred_fallthru
      _
    // Predicated region
    $region38: #{tpu_custom_call.1} parent=1 // pred_check
      _
    $region39: #{tpu_custom_call.1} parent=1 // pred_check_branch
      %90 = sbr.rel (0) target = $region41
    $region40: #{tpu_custom_call.1} parent=1 // pred_region
      _
    $region41: #{tpu_custom_call.1} parent=1 // pred_fallthru
      _
    // Predicated region
    $region42: #{tpu_custom_call.1} parent=1 // pred_check
      _
    $region43: #{tpu_custom_call.1} parent=1 // pred_check_branch
      %92 = sbr.rel (0) target = $region45
    $region44: #{tpu_custom_call.1} parent=1 // pred_region
      %93 = dma.done [#allocation6], 64
    $region45: #{tpu_custom_call.1} parent=1 // pred_fallthru
      _
    // Predicated region
    $region46: #{tpu_custom_call.1} parent=1 // pred_check
      _
    $region47: #{tpu_custom_call.1} parent=1 // pred_check_branch
      %95 = sbr.rel (0) target = $region49
    $region48: #{tpu_custom_call.1} parent=1 // pred_region
      %96 = dma.done [#allocation9], 1024
    $region49: #{tpu_custom_call.1} parent=1 // pred_fallthru
      _
    // Predicated region
    $region50: #{tpu_custom_call.1} parent=1 // pred_check
      _
    $region51: #{tpu_custom_call.1} parent=1 // pred_check_branch
      %98 = sbr.rel (0) target = $region53
    $region52: #{tpu_custom_call.1} parent=1 // pred_region
      %99 = dma.done [#allocation9], 4096
    $region53: #{tpu_custom_call.1} parent=1 // pred_fallthru
      _
    // Predicated region
    $region54: #{tpu_custom_call.1} parent=1 // pred_check
      _
    $region55: #{tpu_custom_call.1} parent=1 // pred_check_branch
      %101 = sbr.rel (0) target = $region57
    $region56: #{tpu_custom_call.1} parent=1 // pred_region
      %102 = dma.done [#allocation12], 4096
    $region57: #{tpu_custom_call.1} parent=1 // pred_fallthru
      _
    // Predicated region
    $region58: #{tpu_custom_call.1} parent=1 // pred_check
      _
    $region59: #{tpu_custom_call.1} parent=1 // pred_check_branch
      %104 = sbr.rel (0) target = $region61
    $region60: #{tpu_custom_call.1} parent=1 // pred_region
      %105 = dma.done [#allocation12], 1024
    $region61: #{tpu_custom_call.1} parent=1 // pred_fallthru
      _
    %v107 = vld [vmem:[#allocation5] sm:$0xf]
    %v108 = vld [vmem:[#allocation8] sm:$0xf]
    %v109 = vld [vmem:[#allocation8 + $0x4] sm:$0xf]
    %v110 = vld [vmem:[#allocation8 + $0x8] sm:$0xf]
    %v111 = vld [vmem:[#allocation8 + $0xc] sm:$0xf]
    %v112 = vld [vmem:[#allocation8 + $0x10] sm:$0xf]
    %v113 = vld [vmem:[#allocation8 + $0x14] sm:$0xf]
    %v114 = vld [vmem:[#allocation8 + $0x18] sm:$0xf]
    %v115 = vld [vmem:[#allocation8 + $0x1c] sm:$0xf]
    %v116 = vld [vmem:[#allocation8 + $0x20] sm:$0xf]
    %v117 = vld [vmem:[#allocation8 + $0x24] sm:$0xf]
    %v118 = vld [vmem:[#allocation8 + $0x28] sm:$0xf]
    %v119 = vld [vmem:[#allocation8 + $0x2c] sm:$0xf]
    %v120 = vld [vmem:[#allocation8 + $0x30] sm:$0xf]
    %v121 = vld [vmem:[#allocation8 + $0x34] sm:$0xf]
    %v122 = vld [vmem:[#allocation8 + $0x38] sm:$0xf]
    %v123 = vld [vmem:[#allocation8 + $0x3c] sm:$0xf]
    %v124 = vld [vmem:[%s2] sm:$0x1]
    %v126 = vlaneseq
    %v127 = vshrl.u32 %v126, 7
    %v128 = vsub.s32 0, %v127
    %v129 = vrot.slane %v124, %v128
    %v147 = vunpack.c.l.b16 %v108
    %v148 = vunpack.c.l.b16 %v109
    %v149 = vunpack.c.l.b16 %v110
    %v150 = vunpack.c.l.b16 %v111
    %v151 = vunpack.c.l.b16 %v112
    %v152 = vunpack.c.l.b16 %v113
    %v153 = vunpack.c.l.b16 %v114
    %v154 = vunpack.c.l.b16 %v115
    %v155 = vunpack.c.l.b16 %v116
    %v156 = vunpack.c.l.b16 %v117
    %v157 = vunpack.c.l.b16 %v118
    %v158 = vunpack.c.l.b16 %v119
    %v159 = vunpack.c.l.b16 %v120
    %v160 = vunpack.c.l.b16 %v121
    %v161 = vunpack.c.l.b16 %v122
    %v162 = vunpack.c.l.b16 %v123
    %v163 = vpack.c.b16 %v148, %v147
    %v164 = vpack.c.b16 %v150, %v149
    %v165 = vpack.c.b16 %v152, %v151
    %v166 = vpack.c.b16 %v154, %v153
    %v167 = vpack.c.b16 %v156, %v155
    %v168 = vpack.c.b16 %v158, %v157
    %v169 = vpack.c.b16 %v160, %v159
    %v170 = vpack.c.b16 %v162, %v161
    %179 = vmatprep.subr.bf16.mxu0 0
    %180 = vmatpush1.bf16.msra.mxu0 %v163
    %181 = vmatprep.subr.bf16.mxu0 0
    %182 = vmatpush1.bf16.msra.mxu0 %v164
    %183 = vmatprep.subr.bf16.mxu0 0
    %184 = vmatpush1.bf16.msra.mxu0 %v165
    %185 = vmatprep.subr.bf16.mxu0 0
    %186 = vmatpush1.bf16.msra.mxu0 %v166
    %187 = vmatprep.subr.bf16.mxu0 0
    %188 = vmatpush1.bf16.msra.mxu0 %v167
    %189 = vmatprep.subr.bf16.mxu0 0
    %190 = vmatpush1.bf16.msra.mxu0 %v168
    %191 = vmatprep.subr.bf16.mxu0 0
    %192 = vmatpush1.bf16.msra.mxu0 %v169
    %193 = vmatprep.subr.bf16.mxu0 0
    %194 = vmatpush1.bf16.msra.mxu0 %v170
    %195 = vmatprep.subr.bf16.mxu0 0
    %196 = vmatpush1.bf16.msra.mxu0 0
    %197 = vmatprep.subr.bf16.mxu0 0
    %198 = vmatpush1.bf16.msra.mxu0 0
    %199 = vmatprep.subr.bf16.mxu0 0
    %200 = vmatpush1.bf16.msra.mxu0 0
    %201 = vmatprep.subr.bf16.mxu0 0
    %202 = vmatpush1.bf16.msra.mxu0 0
    %203 = vmatprep.subr.bf16.mxu0 0
    %204 = vmatpush1.bf16.msra.mxu0 0
    %205 = vmatprep.subr.bf16.mxu0 0
    %206 = vmatpush1.bf16.msra.mxu0 0
    %207 = vmatprep.subr.bf16.mxu0 0
    %208 = vmatpush1.bf16.msra.mxu0 0
    %209 = vmatprep.subr.bf16.mxu0 0
    %210 = vmatpush1.bf16.msra.mxu0 0
    %211 = vmatprep.mubr.bf16.mxu0 0
    %212 = vmatmul.mubr.bf16.gmra.mrb[0].mxu0 %v107
    %v213 = vpop.f32.mrb[0].mxu0
    %v214 = vadd.f32 %v129, %v213
    %v215 = vpop.f32.mrb[0].mxu0
    %v216 = vpop.f32.mrb[0].mxu0
    %v217 = vpop.f32.mrb[0].mxu0
    %218 = vdwg.mxu0
    %v219 = vxor.u32 %v214, 2147483648
    %v220 = vmul.f32 %v219, 1.442695
    %v221 = vpow.pop %v220
    %v222 = vadd.f32 %v221, 1.0
    %v223 = vrcp.pop %v222
    %v224 = vmul.f32 1.0, %v223
    %v225 = vpack.c.bf16 %v224, %v224
    %v226 = vld [vmem:[#allocation10] sm:$0xff]
    %v227 = vld [vmem:[#allocation10 + $0x8] sm:$0xff]
    %v228 = vld [vmem:[#allocation10 + $0x10] sm:$0xff]
    %v229 = vld [vmem:[#allocation10 + $0x18] sm:$0xff]
    %v230 = vld [vmem:[#allocation10 + $0x20] sm:$0xff]
    %v231 = vld [vmem:[#allocation10 + $0x28] sm:$0xff]
    %v232 = vld [vmem:[#allocation10 + $0x30] sm:$0xff]
    %v233 = vld [vmem:[#allocation10 + $0x38] sm:$0xff]
    %v234 = vld [vmem:[#allocation10 + $0x40] sm:$0xff]
    %v235 = vld [vmem:[#allocation10 + $0x48] sm:$0xff]
    %v236 = vld [vmem:[#allocation10 + $0x50] sm:$0xff]
    %v237 = vld [vmem:[#allocation10 + $0x58] sm:$0xff]
    %v238 = vld [vmem:[#allocation10 + $0x60] sm:$0xff]
    %v239 = vld [vmem:[#allocation10 + $0x68] sm:$0xff]
    %v240 = vld [vmem:[#allocation10 + $0x70] sm:$0xff]
    %v241 = vld [vmem:[#allocation10 + $0x78] sm:$0xff]
    %v242 = vld [vmem:[#allocation10 + $0x80] sm:$0xff]
    %v243 = vld [vmem:[#allocation10 + $0x88] sm:$0xff]
    %v244 = vld [vmem:[#allocation10 + $0x90] sm:$0xff]
    %v245 = vld [vmem:[#allocation10 + $0x98] sm:$0xff]
    %v246 = vld [vmem:[#allocation10 + $0xa0] sm:$0xff]
    %v247 = vld [vmem:[#allocation10 + $0xa8] sm:$0xff]
    %v248 = vld [vmem:[#allocation10 + $0xb0] sm:$0xff]
    %v249 = vld [vmem:[#allocation10 + $0xb8] sm:$0xff]
    %v250 = vld [vmem:[#allocation10 + $0xc0] sm:$0xff]
    %v251 = vld [vmem:[#allocation10 + $0xc8] sm:$0xff]
    %v252 = vld [vmem:[#allocation10 + $0xd0] sm:$0xff]
    %v253 = vld [vmem:[#allocation10 + $0xd8] sm:$0xff]
    %v254 = vld [vmem:[#allocation10 + $0xe0] sm:$0xff]
    %v255 = vld [vmem:[#allocation10 + $0xe8] sm:$0xff]
    %v256 = vld [vmem:[#allocation10 + $0xf0] sm:$0xff]
    %v257 = vld [vmem:[#allocation10 + $0xf8] sm:$0xff]
    %v258 = vld [vmem:[%s5] sm:$0xf]
    %v260 = vlaneseq
    %v261 = vshrl.u32 %v260, 7
    %v262 = vsub.s32 0, %v261
    %v263 = vrot.slane %v258, %v262
    %v264 = vlaneseq
    %v265 = vshrl.u32 %v264, 7
    %v266 = vsub.s32 1, %v265
    %v267 = vrot.slane %v258, %v266
    %v268 = vlaneseq
    %v269 = vshrl.u32 %v268, 7
    %v270 = vsub.s32 2, %v269
    %v271 = vrot.slane %v258, %v270
    %v272 = vlaneseq
    %v273 = vshrl.u32 %v272, 7
    %v274 = vsub.s32 3, %v273
    %v275 = vrot.slane %v258, %v274
    %v312 = vunpack.c.l.b16 %v226
    %v313 = vunpack.c.h.b16 %v226
    %v314 = vunpack.c.l.b16 %v227
    %v315 = vunpack.c.h.b16 %v227
    %v316 = vunpack.c.l.b16 %v228
    %v317 = vunpack.c.h.b16 %v228
    %v318 = vunpack.c.l.b16 %v229
    %v319 = vunpack.c.h.b16 %v229
    %v320 = vunpack.c.l.b16 %v230
    %v321 = vunpack.c.h.b16 %v230
    %v322 = vunpack.c.l.b16 %v231
    %v323 = vunpack.c.h.b16 %v231
    %v324 = vunpack.c.l.b16 %v232
    %v325 = vunpack.c.h.b16 %v232
    %v326 = vunpack.c.l.b16 %v233
    %v327 = vunpack.c.h.b16 %v233
    %v328 = vunpack.c.l.b16 %v234
    %v329 = vunpack.c.h.b16 %v234
    %v330 = vunpack.c.l.b16 %v235
    %v331 = vunpack.c.h.b16 %v235
    %v332 = vunpack.c.l.b16 %v236
    %v333 = vunpack.c.h.b16 %v236
    %v334 = vunpack.c.l.b16 %v237
    %v335 = vunpack.c.h.b16 %v237
    %v336 = vunpack.c.l.b16 %v238
    %v337 = vunpack.c.h.b16 %v238
    %v338 = vunpack.c.l.b16 %v239
    %v339 = vunpack.c.h.b16 %v239
    %v340 = vunpack.c.l.b16 %v240
    %v341 = vunpack.c.h.b16 %v240
    %v342 = vunpack.c.l.b16 %v241
    %v343 = vunpack.c.h.b16 %v241
    %v344 = vunpack.c.l.b16 %v242
    %v345 = vunpack.c.h.b16 %v242
    %v346 = vunpack.c.l.b16 %v243
    %v347 = vunpack.c.h.b16 %v243
    %v348 = vunpack.c.l.b16 %v244
    %v349 = vunpack.c.h.b16 %v244
    %v350 = vunpack.c.l.b16 %v245
    %v351 = vunpack.c.h.b16 %v245
    %v352 = vunpack.c.l.b16 %v246
    %v353 = vunpack.c.h.b16 %v246
    %v354 = vunpack.c.l.b16 %v247
    %v355 = vunpack.c.h.b16 %v247
    %v356 = vunpack.c.l.b16 %v248
    %v357 = vunpack.c.h.b16 %v248
    %v358 = vunpack.c.l.b16 %v249
    %v359 = vunpack.c.h.b16 %v249
    %v360 = vunpack.c.l.b16 %v250
    %v361 = vunpack.c.h.b16 %v250
    %v362 = vunpack.c.l.b16 %v251
    %v363 = vunpack.c.h.b16 %v251
    %v364 = vunpack.c.l.b16 %v252
    %v365 = vunpack.c.h.b16 %v252
    %v366 = vunpack.c.l.b16 %v253
    %v367 = vunpack.c.h.b16 %v253
    %v368 = vunpack.c.l.b16 %v254
    %v369 = vunpack.c.h.b16 %v254
    %v370 = vunpack.c.l.b16 %v255
    %v371 = vunpack.c.h.b16 %v255
    %v372 = vunpack.c.l.b16 %v256
    %v373 = vunpack.c.h.b16 %v256
    %v374 = vunpack.c.l.b16 %v257
    %v375 = vunpack.c.h.b16 %v257
    %v376 = vpack.c.b16 %v316, %v312
    %v377 = vpack.c.b16 %v317, %v313
    %v378 = vpack.c.b16 %v318, %v314
    %v379 = vpack.c.b16 %v319, %v315
    %v380 = vpack.c.b16 %v324, %v320
    %v381 = vpack.c.b16 %v325, %v321
    %v382 = vpack.c.b16 %v326, %v322
    %v383 = vpack.c.b16 %v327, %v323
    %v384 = vpack.c.b16 %v332, %v328
    %v385 = vpack.c.b16 %v333, %v329
    %v386 = vpack.c.b16 %v334, %v330
    %v387 = vpack.c.b16 %v335, %v331
    %v388 = vpack.c.b16 %v340, %v336
    %v389 = vpack.c.b16 %v341, %v337
    %v390 = vpack.c.b16 %v342, %v338
    %v391 = vpack.c.b16 %v343, %v339
    %v392 = vpack.c.b16 %v348, %v344
    %v393 = vpack.c.b16 %v349, %v345
    %v394 = vpack.c.b16 %v350, %v346
    %v395 = vpack.c.b16 %v351, %v347
    %v396 = vpack.c.b16 %v356, %v352
    %v397 = vpack.c.b16 %v357, %v353
    %v398 = vpack.c.b16 %v358, %v354
    %v399 = vpack.c.b16 %v359, %v355
    %v400 = vpack.c.b16 %v364, %v360
    %v401 = vpack.c.b16 %v365, %v361
    %v402 = vpack.c.b16 %v366, %v362
    %v403 = vpack.c.b16 %v367, %v363
    %v404 = vpack.c.b16 %v372, %v368
    %v405 = vpack.c.b16 %v373, %v369
    %v406 = vpack.c.b16 %v374, %v370
    %v407 = vpack.c.b16 %v375, %v371
    %440 = vmatprep.subr.bf16.mxu0 %v377
    %441 = vmatpush1.bf16.msra.mxu0 %v376
    %442 = vmatprep.subr.bf16.mxu0 %v381
    %443 = vmatpush1.bf16.msra.mxu0 %v380
    %444 = vmatprep.subr.bf16.mxu0 %v385
    %445 = vmatpush1.bf16.msra.mxu0 %v384
    %446 = vmatprep.subr.bf16.mxu0 %v389
    %447 = vmatpush1.bf16.msra.mxu0 %v388
    %448 = vmatprep.subr.bf16.mxu0 %v393
    %449 = vmatpush1.bf16.msra.mxu0 %v392
    %450 = vmatprep.subr.bf16.mxu0 %v397
    %451 = vmatpush1.bf16.msra.mxu0 %v396
    %452 = vmatprep.subr.bf16.mxu0 %v401
    %453 = vmatpush1.bf16.msra.mxu0 %v400
    %454 = vmatprep.subr.bf16.mxu0 %v405
    %455 = vmatpush1.bf16.msra.mxu0 %v404
    %456 = vmatprep.subr.bf16.mxu0 0
    %457 = vmatpush1.bf16.msra.mxu0 0
    %458 = vmatprep.subr.bf16.mxu0 0
    %459 = vmatpush1.bf16.msra.mxu0 0
    %460 = vmatprep.subr.bf16.mxu0 0
    %461 = vmatpush1.bf16.msra.mxu0 0
    %462 = vmatprep.subr.bf16.mxu0 0
    %463 = vmatpush1.bf16.msra.mxu0 0
    %464 = vmatprep.subr.bf16.mxu0 0
    %465 = vmatpush1.bf16.msra.mxu0 0
    %466 = vmatprep.subr.bf16.mxu0 0
    %467 = vmatpush1.bf16.msra.mxu0 0
    %468 = vmatprep.subr.bf16.mxu0 0
    %469 = vmatpush1.bf16.msra.mxu0 0
    %470 = vmatprep.subr.bf16.mxu0 0
    %471 = vmatpush1.bf16.msra.mxu0 0
    %472 = vmatprep.mubr.bf16.mxu0 0
    %473 = vmatmul.mubr.bf16.gmra.mrb[0].mxu0 %v225
    %v474 = vpop.f32.mrb[0].mxu0
    %v475 = vadd.f32 %v263, %v474
    %v476 = vpop.f32.mrb[0].mxu0
    %v477 = vadd.f32 %v267, %v476
    %v478 = vpop.f32.mrb[0].mxu0
    %v479 = vpop.f32.mrb[0].mxu0
    %480 = vdwg.mxu0
    %481 = vmatprep.subr.bf16.mxu0 %v379
    %482 = vmatpush1.bf16.msra.mxu0 %v378
    %483 = vmatprep.subr.bf16.mxu0 %v383
    %484 = vmatpush1.bf16.msra.mxu0 %v382
    %485 = vmatprep.subr.bf16.mxu0 %v387
    %486 = vmatpush1.bf16.msra.mxu0 %v386
    %487 = vmatprep.subr.bf16.mxu0 %v391
    %488 = vmatpush1.bf16.msra.mxu0 %v390
    %489 = vmatprep.subr.bf16.mxu0 %v395
    %490 = vmatpush1.bf16.msra.mxu0 %v394
    %491 = vmatprep.subr.bf16.mxu0 %v399
    %492 = vmatpush1.bf16.msra.mxu0 %v398
    %493 = vmatprep.subr.bf16.mxu0 %v403
    %494 = vmatpush1.bf16.msra.mxu0 %v402
    %495 = vmatprep.subr.bf16.mxu0 %v407
    %496 = vmatpush1.bf16.msra.mxu0 %v406
    %497 = vmatprep.subr.bf16.mxu0 0
    %498 = vmatpush1.bf16.msra.mxu0 0
    %499 = vmatprep.subr.bf16.mxu0 0
    %500 = vmatpush1.bf16.msra.mxu0 0
    %501 = vmatprep.subr.bf16.mxu0 0
    %502 = vmatpush1.bf16.msra.mxu0 0
    %503 = vmatprep.subr.bf16.mxu0 0
    %504 = vmatpush1.bf16.msra.mxu0 0
    %505 = vmatprep.subr.bf16.mxu0 0
    %506 = vmatpush1.bf16.msra.mxu0 0
    %507 = vmatprep.subr.bf16.mxu0 0
    %508 = vmatpush1.bf16.msra.mxu0 0
    %509 = vmatprep.subr.bf16.mxu0 0
    %510 = vmatpush1.bf16.msra.mxu0 0
    %511 = vmatprep.subr.bf16.mxu0 0
    %512 = vmatpush1.bf16.msra.mxu0 0
    %513 = vmatprep.mubr.bf16.mxu0 0
    %514 = vmatmul.mubr.bf16.gmra.mrb[0].mxu0 %v225
    %v515 = vpop.f32.mrb[0].mxu0
    %v516 = vadd.f32 %v271, %v515
    %v517 = vpop.f32.mrb[0].mxu0
    %v518 = vadd.f32 %v275, %v517
    %v519 = vpop.f32.mrb[0].mxu0
    %v520 = vpop.f32.mrb[0].mxu0
    %521 = vdwg.mxu0
    %522 = vst [vmem:[#allocation2] sm:$0xff] %v475
    %523 = vst [vmem:[#allocation2 + $0x8] sm:$0xff] %v477
    %524 = vst [vmem:[#allocation2 + $0x10] sm:$0xff] %v516
    %525 = vst [vmem:[#allocation2 + $0x18] sm:$0xff] %v518
    %v526 = vld [vmem:[%s8] sm:$0x1]
    %v527 = vld [vmem:[%s9] sm:$0x1]
    %s528 = smul.u32 0, 4
    %s529 = smul.addr %s528, 8
    %s530 = scalar_lea.vmem [#allocation2], %s529
    %v531 = vld [vmem:[%s530] sm:$0xff]
    %v532 = vld [vmem:[%s530 + $0x8] sm:$0xff]
    %v533 = vld [vmem:[%s530 + $0x10] sm:$0xff]
    %v534 = vld [vmem:[%s530 + $0x18] sm:$0xff]
    %v535 = vpack.c.bf16 %v526, %v526
    %v536 = vld [vmem:[#allocation11] sm:$0xff]
    %v537 = vld [vmem:[#allocation11 + $0x8] sm:$0xff]
    %v538 = vld [vmem:[#allocation11 + $0x10] sm:$0xff]
    %v539 = vld [vmem:[#allocation11 + $0x18] sm:$0xff]
    %v540 = vld [vmem:[#allocation11 + $0x20] sm:$0xff]
    %v541 = vld [vmem:[#allocation11 + $0x28] sm:$0xff]
    %v542 = vld [vmem:[#allocation11 + $0x30] sm:$0xff]
    %v543 = vld [vmem:[#allocation11 + $0x38] sm:$0xff]
    %v544 = vld [vmem:[#allocation11 + $0x40] sm:$0xff]
    %v545 = vld [vmem:[#allocation11 + $0x48] sm:$0xff]
    %v546 = vld [vmem:[#allocation11 + $0x50] sm:$0xff]
    %v547 = vld [vmem:[#allocation11 + $0x58] sm:$0xff]
    %v548 = vld [vmem:[#allocation11 + $0x60] sm:$0xff]
    %v549 = vld [vmem:[#allocation11 + $0x68] sm:$0xff]
    %v550 = vld [vmem:[#allocation11 + $0x70] sm:$0xff]
    %v551 = vld [vmem:[#allocation11 + $0x78] sm:$0xff]
    %v552 = vld [vmem:[#allocation11 + $0x80] sm:$0xff]
    %v553 = vld [vmem:[#allocation11 + $0x88] sm:$0xff]
    %v554 = vld [vmem:[#allocation11 + $0x90] sm:$0xff]
    %v555 = vld [vmem:[#allocation11 + $0x98] sm:$0xff]
    %v556 = vld [vmem:[#allocation11 + $0xa0] sm:$0xff]
    %v557 = vld [vmem:[#allocation11 + $0xa8] sm:$0xff]
    %v558 = vld [vmem:[#allocation11 + $0xb0] sm:$0xff]
    %v559 = vld [vmem:[#allocation11 + $0xb8] sm:$0xff]
    %v560 = vld [vmem:[#allocation11 + $0xc0] sm:$0xff]
    %v561 = vld [vmem:[#allocation11 + $0xc8] sm:$0xff]
    %v562 = vld [vmem:[#allocation11 + $0xd0] sm:$0xff]
    %v563 = vld [vmem:[#allocation11 + $0xd8] sm:$0xff]
    %v564 = vld [vmem:[#allocation11 + $0xe0] sm:$0xff]
    %v565 = vld [vmem:[#allocation11 + $0xe8] sm:$0xff]
    %v566 = vld [vmem:[#allocation11 + $0xf0] sm:$0xff]
    %v567 = vld [vmem:[#allocation11 + $0xf8] sm:$0xff]
    %v600 = vunpack.c.l.b16 %v536
    %v601 = vunpack.c.h.b16 %v536
    %v602 = vunpack.c.l.b16 %v537
    %v603 = vunpack.c.h.b16 %v537
    %v604 = vunpack.c.l.b16 %v538
    %v605 = vunpack.c.h.b16 %v538
    %v606 = vunpack.c.l.b16 %v539
    %v607 = vunpack.c.h.b16 %v539
    %v608 = vunpack.c.l.b16 %v540
    %v609 = vunpack.c.h.b16 %v540
    %v610 = vunpack.c.l.b16 %v541
    %v611 = vunpack.c.h.b16 %v541
    %v612 = vunpack.c.l.b16 %v542
    %v613 = vunpack.c.h.b16 %v542
    %v614 = vunpack.c.l.b16 %v543
    %v615 = vunpack.c.h.b16 %v543
    %v616 = vunpack.c.l.b16 %v544
    %v617 = vunpack.c.h.b16 %v544
    %v618 = vunpack.c.l.b16 %v545
    %v619 = vunpack.c.h.b16 %v545
    %v620 = vunpack.c.l.b16 %v546
    %v621 = vunpack.c.h.b16 %v546
    %v622 = vunpack.c.l.b16 %v547
    %v623 = vunpack.c.h.b16 %v547
    %v624 = vunpack.c.l.b16 %v548
    %v625 = vunpack.c.h.b16 %v548
    %v626 = vunpack.c.l.b16 %v549
    %v627 = vunpack.c.h.b16 %v549
    %v628 = vunpack.c.l.b16 %v550
    %v629 = vunpack.c.h.b16 %v550
    %v630 = vunpack.c.l.b16 %v551
    %v631 = vunpack.c.h.b16 %v551
    %v632 = vunpack.c.l.b16 %v552
    %v633 = vunpack.c.h.b16 %v552
    %v634 = vunpack.c.l.b16 %v553
    %v635 = vunpack.c.h.b16 %v553
    %v636 = vunpack.c.l.b16 %v554
    %v637 = vunpack.c.h.b16 %v554
    %v638 = vunpack.c.l.b16 %v555
    %v639 = vunpack.c.h.b16 %v555
    %v640 = vunpack.c.l.b16 %v556
    %v641 = vunpack.c.h.b16 %v556
    %v642 = vunpack.c.l.b16 %v557
    %v643 = vunpack.c.h.b16 %v557
    %v644 = vunpack.c.l.b16 %v558
    %v645 = vunpack.c.h.b16 %v558
    %v646 = vunpack.c.l.b16 %v559
    %v647 = vunpack.c.h.b16 %v559
    %v648 = vunpack.c.l.b16 %v560
    %v649 = vunpack.c.h.b16 %v560
    %v650 = vunpack.c.l.b16 %v561
    %v651 = vunpack.c.h.b16 %v561
    %v652 = vunpack.c.l.b16 %v562
    %v653 = vunpack.c.h.b16 %v562
    %v654 = vunpack.c.l.b16 %v563
    %v655 = vunpack.c.h.b16 %v563
    %v656 = vunpack.c.l.b16 %v564
    %v657 = vunpack.c.h.b16 %v564
    %v658 = vunpack.c.l.b16 %v565
    %v659 = vunpack.c.h.b16 %v565
    %v660 = vunpack.c.l.b16 %v566
    %v661 = vunpack.c.h.b16 %v566
    %v662 = vunpack.c.l.b16 %v567
    %v663 = vunpack.c.h.b16 %v567
    %v664 = vpack.c.b16 %v604, %v600
    %v665 = vpack.c.b16 %v605, %v601
    %v666 = vpack.c.b16 %v606, %v602
    %v667 = vpack.c.b16 %v607, %v603
    %v668 = vpack.c.b16 %v612, %v608
    %v669 = vpack.c.b16 %v613, %v609
    %v670 = vpack.c.b16 %v614, %v610
    %v671 = vpack.c.b16 %v615, %v611
    %v672 = vpack.c.b16 %v620, %v616
    %v673 = vpack.c.b16 %v621, %v617
    %v674 = vpack.c.b16 %v622, %v618
    %v675 = vpack.c.b16 %v623, %v619
    %v676 = vpack.c.b16 %v628, %v624
    %v677 = vpack.c.b16 %v629, %v625
    %v678 = vpack.c.b16 %v630, %v626
    %v679 = vpack.c.b16 %v631, %v627
    %v680 = vpack.c.b16 %v636, %v632
    %v681 = vpack.c.b16 %v637, %v633
    %v682 = vpack.c.b16 %v638, %v634
    %v683 = vpack.c.b16 %v639, %v635
    %v684 = vpack.c.b16 %v644, %v640
    %v685 = vpack.c.b16 %v645, %v641
    %v686 = vpack.c.b16 %v646, %v642
    %v687 = vpack.c.b16 %v647, %v643
    %v688 = vpack.c.b16 %v652, %v648
    %v689 = vpack.c.b16 %v653, %v649
    %v690 = vpack.c.b16 %v654, %v650
    %v691 = vpack.c.b16 %v655, %v651
    %v692 = vpack.c.b16 %v660, %v656
    %v693 = vpack.c.b16 %v661, %v657
    %v694 = vpack.c.b16 %v662, %v658
    %v695 = vpack.c.b16 %v663, %v659
    %728 = vmatprep.subr.bf16.mxu0 %v665
    %729 = vmatpush1.bf16.msra.mxu0 %v664
    %730 = vmatprep.subr.bf16.mxu0 %v669
    %731 = vmatpush1.bf16.msra.mxu0 %v668
    %732 = vmatprep.subr.bf16.mxu0 %v673
    %733 = vmatpush1.bf16.msra.mxu0 %v672
    %734 = vmatprep.subr.bf16.mxu0 %v677
    %735 = vmatpush1.bf16.msra.mxu0 %v676
    %736 = vmatprep.subr.bf16.mxu0 %v681
    %737 = vmatpush1.bf16.msra.mxu0 %v680
    %738 = vmatprep.subr.bf16.mxu0 %v685
    %739 = vmatpush1.bf16.msra.mxu0 %v684
    %740 = vmatprep.subr.bf16.mxu0 %v689
    %741 = vmatpush1.bf16.msra.mxu0 %v688
    %742 = vmatprep.subr.bf16.mxu0 %v693
    %743 = vmatpush1.bf16.msra.mxu0 %v692
    %744 = vmatprep.subr.bf16.mxu0 0
    %745 = vmatpush1.bf16.msra.mxu0 0
    %746 = vmatprep.subr.bf16.mxu0 0
    %747 = vmatpush1.bf16.msra.mxu0 0
    %748 = vmatprep.subr.bf16.mxu0 0
    %749 = vmatpush1.bf16.msra.mxu0 0
    %750 = vmatprep.subr.bf16.mxu0 0
    %751 = vmatpush1.bf16.msra.mxu0 0
    %752 = vmatprep.subr.bf16.mxu0 0
    %753 = vmatpush1.bf16.msra.mxu0 0
    %754 = vmatprep.subr.bf16.mxu0 0
    %755 = vmatpush1.bf16.msra.mxu0 0
    %756 = vmatprep.subr.bf16.mxu0 0
    %757 = vmatpush1.bf16.msra.mxu0 0
    %758 = vmatprep.subr.bf16.mxu0 0
    %759 = vmatpush1.bf16.msra.mxu0 0
    %760 = vmatprep.mubr.bf16.mxu0 0
    %761 = vmatmul.mubr.bf16.gmra.mrb[0].mxu0 %v535
    %v762 = vpop.f32.mrb[0].mxu0
    %v763 = vadd.f32 0.0, %v762
    %v764 = vpop.f32.mrb[0].mxu0
    %v765 = vadd.f32 0.0, %v764
    %v766 = vpop.f32.mrb[0].mxu0
    %v767 = vpop.f32.mrb[0].mxu0
    %768 = vdwg.mxu0
    %769 = vmatprep.subr.bf16.mxu0 %v667
    %770 = vmatpush1.bf16.msra.mxu0 %v666
    %771 = vmatprep.subr.bf16.mxu0 %v671
    %772 = vmatpush1.bf16.msra.mxu0 %v670
    %773 = vmatprep.subr.bf16.mxu0 %v675
    %774 = vmatpush1.bf16.msra.mxu0 %v674
    %775 = vmatprep.subr.bf16.mxu0 %v679
    %776 = vmatpush1.bf16.msra.mxu0 %v678
    %777 = vmatprep.subr.bf16.mxu0 %v683
    %778 = vmatpush1.bf16.msra.mxu0 %v682
    %779 = vmatprep.subr.bf16.mxu0 %v687
    %780 = vmatpush1.bf16.msra.mxu0 %v686
    %781 = vmatprep.subr.bf16.mxu0 %v691
    %782 = vmatpush1.bf16.msra.mxu0 %v690
    %783 = vmatprep.subr.bf16.mxu0 %v695
    %784 = vmatpush1.bf16.msra.mxu0 %v694
    %785 = vmatprep.subr.bf16.mxu0 0
    %786 = vmatpush1.bf16.msra.mxu0 0
    %787 = vmatprep.subr.bf16.mxu0 0
    %788 = vmatpush1.bf16.msra.mxu0 0
    %789 = vmatprep.subr.bf16.mxu0 0
    %790 = vmatpush1.bf16.msra.mxu0 0
    %791 = vmatprep.subr.bf16.mxu0 0
    %792 = vmatpush1.bf16.msra.mxu0 0
    %793 = vmatprep.subr.bf16.mxu0 0
    %794 = vmatpush1.bf16.msra.mxu0 0
    %795 = vmatprep.subr.bf16.mxu0 0
    %796 = vmatpush1.bf16.msra.mxu0 0
    %797 = vmatprep.subr.bf16.mxu0 0
    %798 = vmatpush1.bf16.msra.mxu0 0
    %799 = vmatprep.subr.bf16.mxu0 0
    %800 = vmatpush1.bf16.msra.mxu0 0
    %801 = vmatprep.mubr.bf16.mxu0 0
    %802 = vmatmul.mubr.bf16.gmra.mrb[0].mxu0 %v535
    %v803 = vpop.f32.mrb[0].mxu0
    %v804 = vadd.f32 0.0, %v803
    %v805 = vpop.f32.mrb[0].mxu0
    %v806 = vadd.f32 0.0, %v805
    %v807 = vpop.f32.mrb[0].mxu0
    %v808 = vpop.f32.mrb[0].mxu0
    %809 = vdwg.mxu0
    %v810 = vadd.f32 %v531, %v763
    %v811 = vadd.f32 %v532, %v765
    %v812 = vadd.f32 %v533, %v804
    %v813 = vadd.f32 %v534, %v806
    %v814 = vxor.u32 %v810, 2147483648
    %v815 = vmul.f32 %v814, 1.442695
    %v816 = vpow.pop %v815
    %v817 = vadd.f32 %v816, 1.0
    %v818 = vrcp.pop %v817
    %v819 = vmul.f32 1.0, %v818
    %v820 = vxor.u32 %v811, 2147483648
    %v821 = vmul.f32 %v820, 1.442695
    %v822 = vpow.pop %v821
    %v823 = vadd.f32 %v822, 1.0
    %v824 = vrcp.pop %v823
    %v825 = vmul.f32 1.0, %v824
    %v826 = vtanh.pop %v812
    %v827 = vxor.u32 %v813, 2147483648
    %v828 = vmul.f32 %v827, 1.442695
    %v829 = vpow.pop %v828
    %v830 = vadd.f32 %v829, 1.0
    %v831 = vrcp.pop %v830
    %v832 = vmul.f32 1.0, %v831
    %v833 = vmul.f32 %v825, %v527
    %v834 = vmul.f32 %v819, %v826
    %v835 = vadd.f32 %v833, %v834
    %v836 = vtanh.pop %v835
    %v837 = vmul.f32 %v832, %v836
    %v838 = vpack.c.bf16 %v837, %v837
    %839 = vmatprep.subr.bf16.mxu0 %v665
    %840 = vmatpush1.bf16.msra.mxu0 %v664
    %841 = vmatprep.subr.bf16.mxu0 %v669
    %842 = vmatpush1.bf16.msra.mxu0 %v668
    %843 = vmatprep.subr.bf16.mxu0 %v673
    %844 = vmatpush1.bf16.msra.mxu0 %v672
    %845 = vmatprep.subr.bf16.mxu0 %v677
    %846 = vmatpush1.bf16.msra.mxu0 %v676
    %847 = vmatprep.subr.bf16.mxu0 %v681
    %848 = vmatpush1.bf16.msra.mxu0 %v680
    %849 = vmatprep.subr.bf16.mxu0 %v685
    %850 = vmatpush1.bf16.msra.mxu0 %v684
    %851 = vmatprep.subr.bf16.mxu0 %v689
    %852 = vmatpush1.bf16.msra.mxu0 %v688
    %853 = vmatprep.subr.bf16.mxu0 %v693
    %854 = vmatpush1.bf16.msra.mxu0 %v692
    %855 = vmatprep.subr.bf16.mxu0 0
    %856 = vmatpush1.bf16.msra.mxu0 0
    %857 = vmatprep.subr.bf16.mxu0 0
    %858 = vmatpush1.bf16.msra.mxu0 0
    %859 = vmatprep.subr.bf16.mxu0 0
    %860 = vmatpush1.bf16.msra.mxu0 0
    %861 = vmatprep.subr.bf16.mxu0 0
    %862 = vmatpush1.bf16.msra.mxu0 0
    %863 = vmatprep.subr.bf16.mxu0 0
    %864 = vmatpush1.bf16.msra.mxu0 0
    %865 = vmatprep.subr.bf16.mxu0 0
    %866 = vmatpush1.bf16.msra.mxu0 0
    %867 = vmatprep.subr.bf16.mxu0 0
    %868 = vmatpush1.bf16.msra.mxu0 0
    %869 = vmatprep.subr.bf16.mxu0 0
    %870 = vmatpush1.bf16.msra.mxu0 0
    %871 = vmatprep.mubr.bf16.mxu0 0
    %872 = vmatmul.mubr.bf16.gmra.mrb[0].mxu0 %v838
    %v873 = vpop.f32.mrb[0].mxu0
    %v874 = vadd.f32 0.0, %v873
    %v875 = vpop.f32.mrb[0].mxu0
    %v876 = vadd.f32 0.0, %v875
    %v877 = vpop.f32.mrb[0].mxu0
    %v878 = vpop.f32.mrb[0].mxu0
    %879 = vdwg.mxu0
    %880 = vmatprep.subr.bf16.mxu0 %v667
    %881 = vmatpush1.bf16.msra.mxu0 %v666
    %882 = vmatprep.subr.bf16.mxu0 %v671
    %883 = vmatpush1.bf16.msra.mxu0 %v670
    %884 = vmatprep.subr.bf16.mxu0 %v675
    %885 = vmatpush1.bf16.msra.mxu0 %v674
    %886 = vmatprep.subr.bf16.mxu0 %v679
    %887 = vmatpush1.bf16.msra.mxu0 %v678
    %888 = vmatprep.subr.bf16.mxu0 %v683
    %889 = vmatpush1.bf16.msra.mxu0 %v682
    %890 = vmatprep.subr.bf16.mxu0 %v687
    %891 = vmatpush1.bf16.msra.mxu0 %v686
    %892 = vmatprep.subr.bf16.mxu0 %v691
    %893 = vmatpush1.bf16.msra.mxu0 %v690
    %894 = vmatprep.subr.bf16.mxu0 %v695
    %895 = vmatpush1.bf16.msra.mxu0 %v694
    %896 = vmatprep.subr.bf16.mxu0 0
    %897 = vmatpush1.bf16.msra.mxu0 0
    %898 = vmatprep.subr.bf16.mxu0 0
    %899 = vmatpush1.bf16.msra.mxu0 0
    %900 = vmatprep.subr.bf16.mxu0 0
    %901 = vmatpush1.bf16.msra.mxu0 0
    %902 = vmatprep.subr.bf16.mxu0 0
    %903 = vmatpush1.bf16.msra.mxu0 0
    %904 = vmatprep.subr.bf16.mxu0 0
    %905 = vmatpush1.bf16.msra.mxu0 0
    %906 = vmatprep.subr.bf16.mxu0 0
    %907 = vmatpush1.bf16.msra.mxu0 0
    %908 = vmatprep.subr.bf16.mxu0 0
    %909 = vmatpush1.bf16.msra.mxu0 0
    %910 = vmatprep.subr.bf16.mxu0 0
    %911 = vmatpush1.bf16.msra.mxu0 0
    %912 = vmatprep.mubr.bf16.mxu0 0
    %913 = vmatmul.mubr.bf16.gmra.mrb[0].mxu0 %v838
    %v914 = vpop.f32.mrb[0].mxu0
    %v915 = vadd.f32 0.0, %v914
    %v916 = vpop.f32.mrb[0].mxu0
    %v917 = vadd.f32 0.0, %v916
    %v918 = vpop.f32.mrb[0].mxu0
    %v919 = vpop.f32.mrb[0].mxu0
    %920 = vdwg.mxu0
    %v925 = vrot.slane %v874, 7
    %v926 = vrot.slane %v876, 7
    %v927 = vrot.slane %v915, 7
    %v928 = vrot.slane %v917, 7
    %v933 = vadd.f32 %v531, %v925
    %v934 = vadd.f32 %v532, %v926
    %v935 = vadd.f32 %v533, %v927
    %v936 = vadd.f32 %v534, %v928
    %v937 = vxor.u32 %v933, 2147483648
    %v938 = vmul.f32 %v937, 1.442695
    %v939 = vpow.pop %v938
    %v940 = vadd.f32 %v939, 1.0
    %v941 = vrcp.pop %v940
    %v942 = vmul.f32 1.0, %v941
    %v943 = vxor.u32 %v934, 2147483648
    %v944 = vmul.f32 %v943, 1.442695
    %v945 = vpow.pop %v944
    %v946 = vadd.f32 %v945, 1.0
    %v947 = vrcp.pop %v946
    %v948 = vmul.f32 1.0, %v947
    %v949 = vtanh.pop %v935
    %v950 = vxor.u32 %v936, 2147483648
    %v951 = vmul.f32 %v950, 1.442695
    %v952 = vpow.pop %v951
    %v953 = vadd.f32 %v952, 1.0
    %v954 = vrcp.pop %v953
    %v955 = vmul.f32 1.0, %v954
    %v957 = vrot.slane %v835, 7
    %v959 = vmul.f32 %v948, %v957
    %v960 = vmul.f32 %v942, %v949
    %v961 = vadd.f32 %v959, %v960
    %v962 = vtanh.pop %v961
    %v963 = vmul.f32 %v955, %v962
    %v964 = vpack.c.bf16 %v963, %v963
    %v966 = vshrl.u32 %v964, 16
    %969 = vmatprep.subr.bf16.mxu0 %v665
    %970 = vmatpush1.bf16.msra.mxu0 %v664
    %971 = vmatprep.subr.bf16.mxu0 %v669
    %972 = vmatpush1.bf16.msra.mxu0 %v668
    %973 = vmatprep.subr.bf16.mxu0 %v673
    %974 = vmatpush1.bf16.msra.mxu0 %v672
    %975 = vmatprep.subr.bf16.mxu0 %v677
    %976 = vmatpush1.bf16.msra.mxu0 %v676
    %977 = vmatprep.subr.bf16.mxu0 %v681
    %978 = vmatpush1.bf16.msra.mxu0 %v680
    %979 = vmatprep.subr.bf16.mxu0 %v685
    %980 = vmatpush1.bf16.msra.mxu0 %v684
    %981 = vmatprep.subr.bf16.mxu0 %v689
    %982 = vmatpush1.bf16.msra.mxu0 %v688
    %983 = vmatprep.subr.bf16.mxu0 %v693
    %984 = vmatpush1.bf16.msra.mxu0 %v692
    %985 = vmatprep.subr.bf16.mxu0 0
    %986 = vmatpush1.bf16.msra.mxu0 0
    %987 = vmatprep.subr.bf16.mxu0 0
    %988 = vmatpush1.bf16.msra.mxu0 0
    %989 = vmatprep.subr.bf16.mxu0 0
    %990 = vmatpush1.bf16.msra.mxu0 0
    %991 = vmatprep.subr.bf16.mxu0 0
    %992 = vmatpush1.bf16.msra.mxu0 0
    %993 = vmatprep.subr.bf16.mxu0 0
    %994 = vmatpush1.bf16.msra.mxu0 0
    %995 = vmatprep.subr.bf16.mxu0 0
    %996 = vmatpush1.bf16.msra.mxu0 0
    %997 = vmatprep.subr.bf16.mxu0 0
    %998 = vmatpush1.bf16.msra.mxu0 0
    %999 = vmatprep.subr.bf16.mxu0 0
    %1000 = vmatpush1.bf16.msra.mxu0 0
    %1001 = vmatprep.mubr.bf16.mxu0 0
    %1002 = vmatmul.mubr.bf16.gmra.mrb[0].mxu0 %v966
    %v1003 = vpop.f32.mrb[0].mxu0
    %v1004 = vadd.f32 0.0, %v1003
    %v1005 = vpop.f32.mrb[0].mxu0
    %v1006 = vadd.f32 0.0, %v1005
    %v1007 = vpop.f32.mrb[0].mxu0
    %v1008 = vpop.f32.mrb[0].mxu0
    %1009 = vdwg.mxu0
    %1010 = vmatprep.subr.bf16.mxu0 %v667
    %1011 = vmatpush1.bf16.msra.mxu0 %v666
    %1012 = vmatprep.subr.bf16.mxu0 %v671
    %1013 = vmatpush1.bf16.msra.mxu0 %v670
    %1014 = vmatprep.subr.bf16.mxu0 %v675
    %1015 = vmatpush1.bf16.msra.mxu0 %v674
    %1016 = vmatprep.subr.bf16.mxu0 %v679
    %1017 = vmatpush1.bf16.msra.mxu0 %v678
    %1018 = vmatprep.subr.bf16.mxu0 %v683
    %1019 = vmatpush1.bf16.msra.mxu0 %v682
    %1020 = vmatprep.subr.bf16.mxu0 %v687
    %1021 = vmatpush1.bf16.msra.mxu0 %v686
    %1022 = vmatprep.subr.bf16.mxu0 %v691
    %1023 = vmatpush1.bf16.msra.mxu0 %v690
    %1024 = vmatprep.subr.bf16.mxu0 %v695
    %1025 = vmatpush1.bf16.msra.mxu0 %v694
    %1026 = vmatprep.subr.bf16.mxu0 0
    %1027 = vmatpush1.bf16.msra.mxu0 0
    %1028 = vmatprep.subr.bf16.mxu0 0
    %1029 = vmatpush1.bf16.msra.mxu0 0
    %1030 = vmatprep.subr.bf16.mxu0 0
    %1031 = vmatpush1.bf16.msra.mxu0 0
    %1032 = vmatprep.subr.bf16.mxu0 0
    %1033 = vmatpush1.bf16.msra.mxu0 0
    %1034 = vmatprep.subr.bf16.mxu0 0
    %1035 = vmatpush1.bf16.msra.mxu0 0
    %1036 = vmatprep.subr.bf16.mxu0 0
    %1037 = vmatpush1.bf16.msra.mxu0 0
    %1038 = vmatprep.subr.bf16.mxu0 0
    %1039 = vmatpush1.bf16.msra.mxu0 0
    %1040 = vmatprep.subr.bf16.mxu0 0
    %1041 = vmatpush1.bf16.msra.mxu0 0
    %1042 = vmatprep.mubr.bf16.mxu0 0
    %1043 = vmatmul.mubr.bf16.gmra.mrb[0].mxu0 %v966
    %v1044 = vpop.f32.mrb[0].mxu0
    %v1045 = vadd.f32 0.0, %v1044
    %v1046 = vpop.f32.mrb[0].mxu0
    %v1047 = vadd.f32 0.0, %v1046
    %v1048 = vpop.f32.mrb[0].mxu0
    %v1049 = vpop.f32.mrb[0].mxu0
    %1050 = vdwg.mxu0
    %v1055 = vrot.slane %v1004, 6
    %v1056 = vrot.slane %v1006, 6
    %v1057 = vrot.slane %v1045, 6
    %v1058 = vrot.slane %v1047, 6
    %v1063 = vadd.f32 %v531, %v1055
    %v1064 = vadd.f32 %v532, %v1056
    %v1065 = vadd.f32 %v533, %v1057
    %v1066 = vadd.f32 %v534, %v1058
    %v1067 = vxor.u32 %v1063, 2147483648
    %v1068 = vmul.f32 %v1067, 1.442695
    %v1069 = vpow.pop %v1068
    %v1070 = vadd.f32 %v1069, 1.0
    %v1071 = vrcp.pop %v1070
    %v1072 = vmul.f32 1.0, %v1071
    %v1073 = vxor.u32 %v1064, 2147483648
    %v1074 = vmul.f32 %v1073, 1.442695
    %v1075 = vpow.pop %v1074
    %v1076 = vadd.f32 %v1075, 1.0
    %v1077 = vrcp.pop %v1076
    %v1078 = vmul.f32 1.0, %v1077
    %v1079 = vtanh.pop %v1065
    %v1080 = vxor.u32 %v1066, 2147483648
    %v1081 = vmul.f32 %v1080, 1.442695
    %v1082 = vpow.pop %v1081
    %v1083 = vadd.f32 %v1082, 1.0
    %v1084 = vrcp.pop %v1083
    %v1085 = vmul.f32 1.0, %v1084
    %v1087 = vrot.slane %v961, 7
    %v1089 = vmul.f32 %v1078, %v1087
    %v1090 = vmul.f32 %v1072, %v1079
    %v1091 = vadd.f32 %v1089, %v1090
    %v1092 = vtanh.pop %v1091
    %v1093 = vmul.f32 %v1085, %v1092
    %v1094 = vpack.c.bf16 %v1093, %v1093
    %v1096 = vrot.slane %v1094, 1
    %1098 = vmatprep.subr.bf16.mxu0 %v665
    %1099 = vmatpush1.bf16.msra.mxu0 %v664
    %1100 = vmatprep.subr.bf16.mxu0 %v669
    %1101 = vmatpush1.bf16.msra.mxu0 %v668
    %1102 = vmatprep.subr.bf16.mxu0 %v673
    %1103 = vmatpush1.bf16.msra.mxu0 %v672
    %1104 = vmatprep.subr.bf16.mxu0 %v677
    %1105 = vmatpush1.bf16.msra.mxu0 %v676
    %1106 = vmatprep.subr.bf16.mxu0 %v681
    %1107 = vmatpush1.bf16.msra.mxu0 %v680
    %1108 = vmatprep.subr.bf16.mxu0 %v685
    %1109 = vmatpush1.bf16.msra.mxu0 %v684
    %1110 = vmatprep.subr.bf16.mxu0 %v689
    %1111 = vmatpush1.bf16.msra.mxu0 %v688
    %1112 = vmatprep.subr.bf16.mxu0 %v693
    %1113 = vmatpush1.bf16.msra.mxu0 %v692
    %1114 = vmatprep.subr.bf16.mxu0 0
    %1115 = vmatpush1.bf16.msra.mxu0 0
    %1116 = vmatprep.subr.bf16.mxu0 0
    %1117 = vmatpush1.bf16.msra.mxu0 0
    %1118 = vmatprep.subr.bf16.mxu0 0
    %1119 = vmatpush1.bf16.msra.mxu0 0
    %1120 = vmatprep.subr.bf16.mxu0 0
    %1121 = vmatpush1.bf16.msra.mxu0 0
    %1122 = vmatprep.subr.bf16.mxu0 0
    %1123 = vmatpush1.bf16.msra.mxu0 0
    %1124 = vmatprep.subr.bf16.mxu0 0
    %1125 = vmatpush1.bf16.msra.mxu0 0
    %1126 = vmatprep.subr.bf16.mxu0 0
    %1127 = vmatpush1.bf16.msra.mxu0 0
    %1128 = vmatprep.subr.bf16.mxu0 0
    %1129 = vmatpush1.bf16.msra.mxu0 0
    %1130 = vmatprep.mubr.bf16.mxu0 0
    %1131 = vmatmul.mubr.bf16.gmra.mrb[0].mxu0 %v1096
    %v1132 = vpop.f32.mrb[0].mxu0
    %v1133 = vadd.f32 0.0, %v1132
    %v1134 = vpop.f32.mrb[0].mxu0
    %v1135 = vadd.f32 0.0, %v1134
    %v1136 = vpop.f32.mrb[0].mxu0
    %v1137 = vpop.f32.mrb[0].mxu0
    %1138 = vdwg.mxu0
    %1139 = vmatprep.subr.bf16.mxu0 %v667
    %1140 = vmatpush1.bf16.msra.mxu0 %v666
    %1141 = vmatprep.subr.bf16.mxu0 %v671
    %1142 = vmatpush1.bf16.msra.mxu0 %v670
    %1143 = vmatprep.subr.bf16.mxu0 %v675
    %1144 = vmatpush1.bf16.msra.mxu0 %v674
    %1145 = vmatprep.subr.bf16.mxu0 %v679
    %1146 = vmatpush1.bf16.msra.mxu0 %v678
    %1147 = vmatprep.subr.bf16.mxu0 %v683
    %1148 = vmatpush1.bf16.msra.mxu0 %v682
    %1149 = vmatprep.subr.bf16.mxu0 %v687
    %1150 = vmatpush1.bf16.msra.mxu0 %v686
    %1151 = vmatprep.subr.bf16.mxu0 %v691
    %1152 = vmatpush1.bf16.msra.mxu0 %v690
    %1153 = vmatprep.subr.bf16.mxu0 %v695
    %1154 = vmatpush1.bf16.msra.mxu0 %v694
    %1155 = vmatprep.subr.bf16.mxu0 0
    %1156 = vmatpush1.bf16.msra.mxu0 0
    %1157 = vmatprep.subr.bf16.mxu0 0
    %1158 = vmatpush1.bf16.msra.mxu0 0
    %1159 = vmatprep.subr.bf16.mxu0 0
    %1160 = vmatpush1.bf16.msra.mxu0 0
    %1161 = vmatprep.subr.bf16.mxu0 0
    %1162 = vmatpush1.bf16.msra.mxu0 0
    %1163 = vmatprep.subr.bf16.mxu0 0
    %1164 = vmatpush1.bf16.msra.mxu0 0
    %1165 = vmatprep.subr.bf16.mxu0 0
    %1166 = vmatpush1.bf16.msra.mxu0 0
    %1167 = vmatprep.subr.bf16.mxu0 0
    %1168 = vmatpush1.bf16.msra.mxu0 0
    %1169 = vmatprep.subr.bf16.mxu0 0
    %1170 = vmatpush1.bf16.msra.mxu0 0
    %1171 = vmatprep.mubr.bf16.mxu0 0
    %1172 = vmatmul.mubr.bf16.gmra.mrb[0].mxu0 %v1096
    %v1173 = vpop.f32.mrb[0].mxu0
    %v1174 = vadd.f32 0.0, %v1173
    %v1175 = vpop.f32.mrb[0].mxu0
    %v1176 = vadd.f32 0.0, %v1175
    %v1177 = vpop.f32.mrb[0].mxu0
    %v1178 = vpop.f32.mrb[0].mxu0
    %1179 = vdwg.mxu0
    %v1184 = vrot.slane %v1133, 5
    %v1185 = vrot.slane %v1135, 5
    %v1186 = vrot.slane %v1174, 5
    %v1187 = vrot.slane %v1176, 5
    %v1192 = vadd.f32 %v531, %v1184
    %v1193 = vadd.f32 %v532, %v1185
    %v1194 = vadd.f32 %v533, %v1186
    %v1195 = vadd.f32 %v534, %v1187
    %v1196 = vxor.u32 %v1192, 2147483648
    %v1197 = vmul.f32 %v1196, 1.442695
    %v1198 = vpow.pop %v1197
    %v1199 = vadd.f32 %v1198, 1.0
    %v1200 = vrcp.pop %v1199
    %v1201 = vmul.f32 1.0, %v1200
    %v1202 = vxor.u32 %v1193, 2147483648
    %v1203 = vmul.f32 %v1202, 1.442695
    %v1204 = vpow.pop %v1203
    %v1205 = vadd.f32 %v1204, 1.0
    %v1206 = vrcp.pop %v1205
    %v1207 = vmul.f32 1.0, %v1206
    %v1208 = vtanh.pop %v1194
    %v1209 = vxor.u32 %v1195, 2147483648
    %v1210 = vmul.f32 %v1209, 1.442695
    %v1211 = vpow.pop %v1210
    %v1212 = vadd.f32 %v1211, 1.0
    %v1213 = vrcp.pop %v1212
    %v1214 = vmul.f32 1.0, %v1213
    %v1216 = vrot.slane %v1091, 7
    %v1218 = vmul.f32 %v1207, %v1216
    %v1219 = vmul.f32 %v1201, %v1208
    %v1220 = vadd.f32 %v1218, %v1219
    %v1221 = vtanh.pop %v1220
    %v1222 = vmul.f32 %v1214, %v1221
    %v1223 = vpack.c.bf16 %v1222, %v1222
    %v1225 = vshrl.u32 %v1223, 16
    %v1227 = vrot.slane %v1225, 1
    %1229 = vmatprep.subr.bf16.mxu0 %v665
    %1230 = vmatpush1.bf16.msra.mxu0 %v664
    %1231 = vmatprep.subr.bf16.mxu0 %v669
    %1232 = vmatpush1.bf16.msra.mxu0 %v668
    %1233 = vmatprep.subr.bf16.mxu0 %v673
    %1234 = vmatpush1.bf16.msra.mxu0 %v672
    %1235 = vmatprep.subr.bf16.mxu0 %v677
    %1236 = vmatpush1.bf16.msra.mxu0 %v676
    %1237 = vmatprep.subr.bf16.mxu0 %v681
    %1238 = vmatpush1.bf16.msra.mxu0 %v680
    %1239 = vmatprep.subr.bf16.mxu0 %v685
    %1240 = vmatpush1.bf16.msra.mxu0 %v684
    %1241 = vmatprep.subr.bf16.mxu0 %v689
    %1242 = vmatpush1.bf16.msra.mxu0 %v688
    %1243 = vmatprep.subr.bf16.mxu0 %v693
    %1244 = vmatpush1.bf16.msra.mxu0 %v692
    %1245 = vmatprep.subr.bf16.mxu0 0
    %1246 = vmatpush1.bf16.msra.mxu0 0
    %1247 = vmatprep.subr.bf16.mxu0 0
    %1248 = vmatpush1.bf16.msra.mxu0 0
    %1249 = vmatprep.subr.bf16.mxu0 0
    %1250 = vmatpush1.bf16.msra.mxu0 0
    %1251 = vmatprep.subr.bf16.mxu0 0
    %1252 = vmatpush1.bf16.msra.mxu0 0
    %1253 = vmatprep.subr.bf16.mxu0 0
    %1254 = vmatpush1.bf16.msra.mxu0 0
    %1255 = vmatprep.subr.bf16.mxu0 0
    %1256 = vmatpush1.bf16.msra.mxu0 0
    %1257 = vmatprep.subr.bf16.mxu0 0
    %1258 = vmatpush1.bf16.msra.mxu0 0
    %1259 = vmatprep.subr.bf16.mxu0 0
    %1260 = vmatpush1.bf16.msra.mxu0 0
    %1261 = vmatprep.mubr.bf16.mxu0 0
    %1262 = vmatmul.mubr.bf16.gmra.mrb[0].mxu0 %v1227
    %v1263 = vpop.f32.mrb[0].mxu0
    %v1264 = vadd.f32 0.0, %v1263
    %v1265 = vpop.f32.mrb[0].mxu0
    %v1266 = vadd.f32 0.0, %v1265
    %v1267 = vpop.f32.mrb[0].mxu0
    %v1268 = vpop.f32.mrb[0].mxu0
    %1269 = vdwg.mxu0
    %1270 = vmatprep.subr.bf16.mxu0 %v667
    %1271 = vmatpush1.bf16.msra.mxu0 %v666
    %1272 = vmatprep.subr.bf16.mxu0 %v671
    %1273 = vmatpush1.bf16.msra.mxu0 %v670
    %1274 = vmatprep.subr.bf16.mxu0 %v675
    %1275 = vmatpush1.bf16.msra.mxu0 %v674
    %1276 = vmatprep.subr.bf16.mxu0 %v679
    %1277 = vmatpush1.bf16.msra.mxu0 %v678
    %1278 = vmatprep.subr.bf16.mxu0 %v683
    %1279 = vmatpush1.bf16.msra.mxu0 %v682
    %1280 = vmatprep.subr.bf16.mxu0 %v687
    %1281 = vmatpush1.bf16.msra.mxu0 %v686
    %1282 = vmatprep.subr.bf16.mxu0 %v691
    %1283 = vmatpush1.bf16.msra.mxu0 %v690
    %1284 = vmatprep.subr.bf16.mxu0 %v695
    %1285 = vmatpush1.bf16.msra.mxu0 %v694
    %1286 = vmatprep.subr.bf16.mxu0 0
    %1287 = vmatpush1.bf16.msra.mxu0 0
    %1288 = vmatprep.subr.bf16.mxu0 0
    %1289 = vmatpush1.bf16.msra.mxu0 0
    %1290 = vmatprep.subr.bf16.mxu0 0
    %1291 = vmatpush1.bf16.msra.mxu0 0
    %1292 = vmatprep.subr.bf16.mxu0 0
    %1293 = vmatpush1.bf16.msra.mxu0 0
    %1294 = vmatprep.subr.bf16.mxu0 0
    %1295 = vmatpush1.bf16.msra.mxu0 0
    %1296 = vmatprep.subr.bf16.mxu0 0
    %1297 = vmatpush1.bf16.msra.mxu0 0
    %1298 = vmatprep.subr.bf16.mxu0 0
    %1299 = vmatpush1.bf16.msra.mxu0 0
    %1300 = vmatprep.subr.bf16.mxu0 0
    %1301 = vmatpush1.bf16.msra.mxu0 0
    %1302 = vmatprep.mubr.bf16.mxu0 0
    %1303 = vmatmul.mubr.bf16.gmra.mrb[0].mxu0 %v1227
    %v1304 = vpop.f32.mrb[0].mxu0
    %v1305 = vadd.f32 0.0, %v1304
    %v1306 = vpop.f32.mrb[0].mxu0
    %v1307 = vadd.f32 0.0, %v1306
    %v1308 = vpop.f32.mrb[0].mxu0
    %v1309 = vpop.f32.mrb[0].mxu0
    %1310 = vdwg.mxu0
    %v1315 = vrot.slane %v1264, 4
    %v1316 = vrot.slane %v1266, 4
    %v1317 = vrot.slane %v1305, 4
    %v1318 = vrot.slane %v1307, 4
    %v1323 = vadd.f32 %v531, %v1315
    %v1324 = vadd.f32 %v532, %v1316
    %v1325 = vadd.f32 %v533, %v1317
    %v1326 = vadd.f32 %v534, %v1318
    %v1327 = vxor.u32 %v1323, 2147483648
    %v1328 = vmul.f32 %v1327, 1.442695
    %v1329 = vpow.pop %v1328
    %v1330 = vadd.f32 %v1329, 1.0
    %v1331 = vrcp.pop %v1330
    %v1332 = vmul.f32 1.0, %v1331
    %v1333 = vxor.u32 %v1324, 2147483648
    %v1334 = vmul.f32 %v1333, 1.442695
    %v1335 = vpow.pop %v1334
    %v1336 = vadd.f32 %v1335, 1.0
    %v1337 = vrcp.pop %v1336
    %v1338 = vmul.f32 1.0, %v1337
    %v1339 = vtanh.pop %v1325
    %v1340 = vxor.u32 %v1326, 2147483648
    %v1341 = vmul.f32 %v1340, 1.442695
    %v1342 = vpow.pop %v1341
    %v1343 = vadd.f32 %v1342, 1.0
    %v1344 = vrcp.pop %v1343
    %v1345 = vmul.f32 1.0, %v1344
    %v1347 = vrot.slane %v1220, 7
    %v1349 = vmul.f32 %v1338, %v1347
    %v1350 = vmul.f32 %v1332, %v1339
    %v1351 = vadd.f32 %v1349, %v1350
    %v1352 = vtanh.pop %v1351
    %v1353 = vmul.f32 %v1345, %v1352
    %v1354 = vpack.c.bf16 %v1353, %v1353
    %v1356 = vrot.slane %v1354, 2
    %1358 = vmatprep.subr.bf16.mxu0 %v665
    %1359 = vmatpush1.bf16.msra.mxu0 %v664
    %1360 = vmatprep.subr.bf16.mxu0 %v669
    %1361 = vmatpush1.bf16.msra.mxu0 %v668
    %1362 = vmatprep.subr.bf16.mxu0 %v673
    %1363 = vmatpush1.bf16.msra.mxu0 %v672
    %1364 = vmatprep.subr.bf16.mxu0 %v677
    %1365 = vmatpush1.bf16.msra.mxu0 %v676
    %1366 = vmatprep.subr.bf16.mxu0 %v681
    %1367 = vmatpush1.bf16.msra.mxu0 %v680
    %1368 = vmatprep.subr.bf16.mxu0 %v685
    %1369 = vmatpush1.bf16.msra.mxu0 %v684
    %1370 = vmatprep.subr.bf16.mxu0 %v689
    %1371 = vmatpush1.bf16.msra.mxu0 %v688
    %1372 = vmatprep.subr.bf16.mxu0 %v693
    %1373 = vmatpush1.bf16.msra.mxu0 %v692
    %1374 = vmatprep.subr.bf16.mxu0 0
    %1375 = vmatpush1.bf16.msra.mxu0 0
    %1376 = vmatprep.subr.bf16.mxu0 0
    %1377 = vmatpush1.bf16.msra.mxu0 0
    %1378 = vmatprep.subr.bf16.mxu0 0
    %1379 = vmatpush1.bf16.msra.mxu0 0
    %1380 = vmatprep.subr.bf16.mxu0 0
    %1381 = vmatpush1.bf16.msra.mxu0 0
    %1382 = vmatprep.subr.bf16.mxu0 0
    %1383 = vmatpush1.bf16.msra.mxu0 0
    %1384 = vmatprep.subr.bf16.mxu0 0
    %1385 = vmatpush1.bf16.msra.mxu0 0
    %1386 = vmatprep.subr.bf16.mxu0 0
    %1387 = vmatpush1.bf16.msra.mxu0 0
    %1388 = vmatprep.subr.bf16.mxu0 0
    %1389 = vmatpush1.bf16.msra.mxu0 0
    %1390 = vmatprep.mubr.bf16.mxu0 0
    %1391 = vmatmul.mubr.bf16.gmra.mrb[0].mxu0 %v1356
    %v1392 = vpop.f32.mrb[0].mxu0
    %v1393 = vadd.f32 0.0, %v1392
    %v1394 = vpop.f32.mrb[0].mxu0
    %v1395 = vadd.f32 0.0, %v1394
    %v1396 = vpop.f32.mrb[0].mxu0
    %v1397 = vpop.f32.mrb[0].mxu0
    %1398 = vdwg.mxu0
    %1399 = vmatprep.subr.bf16.mxu0 %v667
    %1400 = vmatpush1.bf16.msra.mxu0 %v666
    %1401 = vmatprep.subr.bf16.mxu0 %v671
    %1402 = vmatpush1.bf16.msra.mxu0 %v670
    %1403 = vmatprep.subr.bf16.mxu0 %v675
    %1404 = vmatpush1.bf16.msra.mxu0 %v674
    %1405 = vmatprep.subr.bf16.mxu0 %v679
    %1406 = vmatpush1.bf16.msra.mxu0 %v678
    %1407 = vmatprep.subr.bf16.mxu0 %v683
    %1408 = vmatpush1.bf16.msra.mxu0 %v682
    %1409 = vmatprep.subr.bf16.mxu0 %v687
    %1410 = vmatpush1.bf16.msra.mxu0 %v686
    %1411 = vmatprep.subr.bf16.mxu0 %v691
    %1412 = vmatpush1.bf16.msra.mxu0 %v690
    %1413 = vmatprep.subr.bf16.mxu0 %v695
    %1414 = vmatpush1.bf16.msra.mxu0 %v694
    %1415 = vmatprep.subr.bf16.mxu0 0
    %1416 = vmatpush1.bf16.msra.mxu0 0
    %1417 = vmatprep.subr.bf16.mxu0 0
    %1418 = vmatpush1.bf16.msra.mxu0 0
    %1419 = vmatprep.subr.bf16.mxu0 0
    %1420 = vmatpush1.bf16.msra.mxu0 0
    %1421 = vmatprep.subr.bf16.mxu0 0
    %1422 = vmatpush1.bf16.msra.mxu0 0
    %1423 = vmatprep.subr.bf16.mxu0 0
    %1424 = vmatpush1.bf16.msra.mxu0 0
    %1425 = vmatprep.subr.bf16.mxu0 0
    %1426 = vmatpush1.bf16.msra.mxu0 0
    %1427 = vmatprep.subr.bf16.mxu0 0
    %1428 = vmatpush1.bf16.msra.mxu0 0
    %1429 = vmatprep.subr.bf16.mxu0 0
    %1430 = vmatpush1.bf16.msra.mxu0 0
    %1431 = vmatprep.mubr.bf16.mxu0 0
    %1432 = vmatmul.mubr.bf16.gmra.mrb[0].mxu0 %v1356
    %v1433 = vpop.f32.mrb[0].mxu0
    %v1434 = vadd.f32 0.0, %v1433
    %v1435 = vpop.f32.mrb[0].mxu0
    %v1436 = vadd.f32 0.0, %v1435
    %v1437 = vpop.f32.mrb[0].mxu0
    %v1438 = vpop.f32.mrb[0].mxu0
    %1439 = vdwg.mxu0
    %v1444 = vrot.slane %v1393, 3
    %v1445 = vrot.slane %v1395, 3
    %v1446 = vrot.slane %v1434, 3
    %v1447 = vrot.slane %v1436, 3
    %v1452 = vadd.f32 %v531, %v1444
    %v1453 = vadd.f32 %v532, %v1445
    %v1454 = vadd.f32 %v533, %v1446
    %v1455 = vadd.f32 %v534, %v1447
    %v1456 = vxor.u32 %v1452, 2147483648
    %v1457 = vmul.f32 %v1456, 1.442695
    %v1458 = vpow.pop %v1457
    %v1459 = vadd.f32 %v1458, 1.0
    %v1460 = vrcp.pop %v1459
    %v1461 = vmul.f32 1.0, %v1460
    %v1462 = vxor.u32 %v1453, 2147483648
    %v1463 = vmul.f32 %v1462, 1.442695
    %v1464 = vpow.pop %v1463
    %v1465 = vadd.f32 %v1464, 1.0
    %v1466 = vrcp.pop %v1465
    %v1467 = vmul.f32 1.0, %v1466
    %v1468 = vtanh.pop %v1454
    %v1469 = vxor.u32 %v1455, 2147483648
    %v1470 = vmul.f32 %v1469, 1.442695
    %v1471 = vpow.pop %v1470
    %v1472 = vadd.f32 %v1471, 1.0
    %v1473 = vrcp.pop %v1472
    %v1474 = vmul.f32 1.0, %v1473
    %v1476 = vrot.slane %v1351, 7
    %v1478 = vmul.f32 %v1467, %v1476
    %v1479 = vmul.f32 %v1461, %v1468
    %v1480 = vadd.f32 %v1478, %v1479
    %v1481 = vtanh.pop %v1480
    %v1482 = vmul.f32 %v1474, %v1481
    %v1483 = vpack.c.bf16 %v1482, %v1482
    %v1485 = vshrl.u32 %v1483, 16
    %v1487 = vrot.slane %v1485, 2
    %1489 = vmatprep.subr.bf16.mxu0 %v665
    %1490 = vmatpush1.bf16.msra.mxu0 %v664
    %1491 = vmatprep.subr.bf16.mxu0 %v669
    %1492 = vmatpush1.bf16.msra.mxu0 %v668
    %1493 = vmatprep.subr.bf16.mxu0 %v673
    %1494 = vmatpush1.bf16.msra.mxu0 %v672
    %1495 = vmatprep.subr.bf16.mxu0 %v677
    %1496 = vmatpush1.bf16.msra.mxu0 %v676
    %1497 = vmatprep.subr.bf16.mxu0 %v681
    %1498 = vmatpush1.bf16.msra.mxu0 %v680
    %1499 = vmatprep.subr.bf16.mxu0 %v685
    %1500 = vmatpush1.bf16.msra.mxu0 %v684
    %1501 = vmatprep.subr.bf16.mxu0 %v689
    %1502 = vmatpush1.bf16.msra.mxu0 %v688
    %1503 = vmatprep.subr.bf16.mxu0 %v693
    %1504 = vmatpush1.bf16.msra.mxu0 %v692
    %1505 = vmatprep.subr.bf16.mxu0 0
    %1506 = vmatpush1.bf16.msra.mxu0 0
    %1507 = vmatprep.subr.bf16.mxu0 0
    %1508 = vmatpush1.bf16.msra.mxu0 0
    %1509 = vmatprep.subr.bf16.mxu0 0
    %1510 = vmatpush1.bf16.msra.mxu0 0
    %1511 = vmatprep.subr.bf16.mxu0 0
    %1512 = vmatpush1.bf16.msra.mxu0 0
    %1513 = vmatprep.subr.bf16.mxu0 0
    %1514 = vmatpush1.bf16.msra.mxu0 0
    %1515 = vmatprep.subr.bf16.mxu0 0
    %1516 = vmatpush1.bf16.msra.mxu0 0
    %1517 = vmatprep.subr.bf16.mxu0 0
    %1518 = vmatpush1.bf16.msra.mxu0 0
    %1519 = vmatprep.subr.bf16.mxu0 0
    %1520 = vmatpush1.bf16.msra.mxu0 0
    %1521 = vmatprep.mubr.bf16.mxu0 0
    %1522 = vmatmul.mubr.bf16.gmra.mrb[0].mxu0 %v1487
    %v1523 = vpop.f32.mrb[0].mxu0
    %v1524 = vadd.f32 0.0, %v1523
    %v1525 = vpop.f32.mrb[0].mxu0
    %v1526 = vadd.f32 0.0, %v1525
    %v1527 = vpop.f32.mrb[0].mxu0
    %v1528 = vpop.f32.mrb[0].mxu0
    %1529 = vdwg.mxu0
    %1530 = vmatprep.subr.bf16.mxu0 %v667
    %1531 = vmatpush1.bf16.msra.mxu0 %v666
    %1532 = vmatprep.subr.bf16.mxu0 %v671
    %1533 = vmatpush1.bf16.msra.mxu0 %v670
    %1534 = vmatprep.subr.bf16.mxu0 %v675
    %1535 = vmatpush1.bf16.msra.mxu0 %v674
    %1536 = vmatprep.subr.bf16.mxu0 %v679
    %1537 = vmatpush1.bf16.msra.mxu0 %v678
    %1538 = vmatprep.subr.bf16.mxu0 %v683
    %1539 = vmatpush1.bf16.msra.mxu0 %v682
    %1540 = vmatprep.subr.bf16.mxu0 %v687
    %1541 = vmatpush1.bf16.msra.mxu0 %v686
    %1542 = vmatprep.subr.bf16.mxu0 %v691
    %1543 = vmatpush1.bf16.msra.mxu0 %v690
    %1544 = vmatprep.subr.bf16.mxu0 %v695
    %1545 = vmatpush1.bf16.msra.mxu0 %v694
    %1546 = vmatprep.subr.bf16.mxu0 0
    %1547 = vmatpush1.bf16.msra.mxu0 0
    %1548 = vmatprep.subr.bf16.mxu0 0
    %1549 = vmatpush1.bf16.msra.mxu0 0
    %1550 = vmatprep.subr.bf16.mxu0 0
    %1551 = vmatpush1.bf16.msra.mxu0 0
    %1552 = vmatprep.subr.bf16.mxu0 0
    %1553 = vmatpush1.bf16.msra.mxu0 0
    %1554 = vmatprep.subr.bf16.mxu0 0
    %1555 = vmatpush1.bf16.msra.mxu0 0
    %1556 = vmatprep.subr.bf16.mxu0 0
    %1557 = vmatpush1.bf16.msra.mxu0 0
    %1558 = vmatprep.subr.bf16.mxu0 0
    %1559 = vmatpush1.bf16.msra.mxu0 0
    %1560 = vmatprep.subr.bf16.mxu0 0
    %1561 = vmatpush1.bf16.msra.mxu0 0
    %1562 = vmatprep.mubr.bf16.mxu0 0
    %1563 = vmatmul.mubr.bf16.gmra.mrb[0].mxu0 %v1487
    %v1564 = vpop.f32.mrb[0].mxu0
    %v1565 = vadd.f32 0.0, %v1564
    %v1566 = vpop.f32.mrb[0].mxu0
    %v1567 = vadd.f32 0.0, %v1566
    %v1568 = vpop.f32.mrb[0].mxu0
    %v1569 = vpop.f32.mrb[0].mxu0
    %1570 = vdwg.mxu0
    %v1575 = vrot.slane %v1524, 2
    %v1576 = vrot.slane %v1526, 2
    %v1577 = vrot.slane %v1565, 2
    %v1578 = vrot.slane %v1567, 2
    %v1583 = vadd.f32 %v531, %v1575
    %v1584 = vadd.f32 %v532, %v1576
    %v1585 = vadd.f32 %v533, %v1577
    %v1586 = vadd.f32 %v534, %v1578
    %v1587 = vxor.u32 %v1583, 2147483648
    %v1588 = vmul.f32 %v1587, 1.442695
    %v1589 = vpow.pop %v1588
    %v1590 = vadd.f32 %v1589, 1.0
    %v1591 = vrcp.pop %v1590
    %v1592 = vmul.f32 1.0, %v1591
    %v1593 = vxor.u32 %v1584, 2147483648
    %v1594 = vmul.f32 %v1593, 1.442695
    %v1595 = vpow.pop %v1594
    %v1596 = vadd.f32 %v1595, 1.0
    %v1597 = vrcp.pop %v1596
    %v1598 = vmul.f32 1.0, %v1597
    %v1599 = vtanh.pop %v1585
    %v1600 = vxor.u32 %v1586, 2147483648
    %v1601 = vmul.f32 %v1600, 1.442695
    %v1602 = vpow.pop %v1601
    %v1603 = vadd.f32 %v1602, 1.0
    %v1604 = vrcp.pop %v1603
    %v1605 = vmul.f32 1.0, %v1604
    %v1607 = vrot.slane %v1480, 7
    %v1609 = vmul.f32 %v1598, %v1607
    %v1610 = vmul.f32 %v1592, %v1599
    %v1611 = vadd.f32 %v1609, %v1610
    %v1612 = vtanh.pop %v1611
    %v1613 = vmul.f32 %v1605, %v1612
    %v1614 = vpack.c.bf16 %v1613, %v1613
    %v1616 = vrot.slane %v1614, 3
    %1618 = vmatprep.subr.bf16.mxu0 %v665
    %1619 = vmatpush1.bf16.msra.mxu0 %v664
    %1620 = vmatprep.subr.bf16.mxu0 %v669
    %1621 = vmatpush1.bf16.msra.mxu0 %v668
    %1622 = vmatprep.subr.bf16.mxu0 %v673
    %1623 = vmatpush1.bf16.msra.mxu0 %v672
    %1624 = vmatprep.subr.bf16.mxu0 %v677
    %1625 = vmatpush1.bf16.msra.mxu0 %v676
    %1626 = vmatprep.subr.bf16.mxu0 %v681
    %1627 = vmatpush1.bf16.msra.mxu0 %v680
    %1628 = vmatprep.subr.bf16.mxu0 %v685
    %1629 = vmatpush1.bf16.msra.mxu0 %v684
    %1630 = vmatprep.subr.bf16.mxu0 %v689
    %1631 = vmatpush1.bf16.msra.mxu0 %v688
    %1632 = vmatprep.subr.bf16.mxu0 %v693
    %1633 = vmatpush1.bf16.msra.mxu0 %v692
    %1634 = vmatprep.subr.bf16.mxu0 0
    %1635 = vmatpush1.bf16.msra.mxu0 0
    %1636 = vmatprep.subr.bf16.mxu0 0
    %1637 = vmatpush1.bf16.msra.mxu0 0
    %1638 = vmatprep.subr.bf16.mxu0 0
    %1639 = vmatpush1.bf16.msra.mxu0 0
    %1640 = vmatprep.subr.bf16.mxu0 0
    %1641 = vmatpush1.bf16.msra.mxu0 0
    %1642 = vmatprep.subr.bf16.mxu0 0
    %1643 = vmatpush1.bf16.msra.mxu0 0
    %1644 = vmatprep.subr.bf16.mxu0 0
    %1645 = vmatpush1.bf16.msra.mxu0 0
    %1646 = vmatprep.subr.bf16.mxu0 0
    %1647 = vmatpush1.bf16.msra.mxu0 0
    %1648 = vmatprep.subr.bf16.mxu0 0
    %1649 = vmatpush1.bf16.msra.mxu0 0
    %1650 = vmatprep.mubr.bf16.mxu0 0
    %1651 = vmatmul.mubr.bf16.gmra.mrb[0].mxu0 %v1616
    %v1652 = vpop.f32.mrb[0].mxu0
    %v1653 = vadd.f32 0.0, %v1652
    %v1654 = vpop.f32.mrb[0].mxu0
    %v1655 = vadd.f32 0.0, %v1654
    %v1656 = vpop.f32.mrb[0].mxu0
    %v1657 = vpop.f32.mrb[0].mxu0
    %1658 = vdwg.mxu0
    %1659 = vmatprep.subr.bf16.mxu0 %v667
    %1660 = vmatpush1.bf16.msra.mxu0 %v666
    %1661 = vmatprep.subr.bf16.mxu0 %v671
    %1662 = vmatpush1.bf16.msra.mxu0 %v670
    %1663 = vmatprep.subr.bf16.mxu0 %v675
    %1664 = vmatpush1.bf16.msra.mxu0 %v674
    %1665 = vmatprep.subr.bf16.mxu0 %v679
    %1666 = vmatpush1.bf16.msra.mxu0 %v678
    %1667 = vmatprep.subr.bf16.mxu0 %v683
    %1668 = vmatpush1.bf16.msra.mxu0 %v682
    %1669 = vmatprep.subr.bf16.mxu0 %v687
    %1670 = vmatpush1.bf16.msra.mxu0 %v686
    %1671 = vmatprep.subr.bf16.mxu0 %v691
    %1672 = vmatpush1.bf16.msra.mxu0 %v690
    %1673 = vmatprep.subr.bf16.mxu0 %v695
    %1674 = vmatpush1.bf16.msra.mxu0 %v694
    %1675 = vmatprep.subr.bf16.mxu0 0
    %1676 = vmatpush1.bf16.msra.mxu0 0
    %1677 = vmatprep.subr.bf16.mxu0 0
    %1678 = vmatpush1.bf16.msra.mxu0 0
    %1679 = vmatprep.subr.bf16.mxu0 0
    %1680 = vmatpush1.bf16.msra.mxu0 0
    %1681 = vmatprep.subr.bf16.mxu0 0
    %1682 = vmatpush1.bf16.msra.mxu0 0
    %1683 = vmatprep.subr.bf16.mxu0 0
    %1684 = vmatpush1.bf16.msra.mxu0 0
    %1685 = vmatprep.subr.bf16.mxu0 0
    %1686 = vmatpush1.bf16.msra.mxu0 0
    %1687 = vmatprep.subr.bf16.mxu0 0
    %1688 = vmatpush1.bf16.msra.mxu0 0
    %1689 = vmatprep.subr.bf16.mxu0 0
    %1690 = vmatpush1.bf16.msra.mxu0 0
    %1691 = vmatprep.mubr.bf16.mxu0 0
    %1692 = vmatmul.mubr.bf16.gmra.mrb[0].mxu0 %v1616
    %v1693 = vpop.f32.mrb[0].mxu0
    %v1694 = vadd.f32 0.0, %v1693
    %v1695 = vpop.f32.mrb[0].mxu0
    %v1696 = vadd.f32 0.0, %v1695
    %v1697 = vpop.f32.mrb[0].mxu0
    %v1698 = vpop.f32.mrb[0].mxu0
    %1699 = vdwg.mxu0
    %v1704 = vrot.slane %v1653, 1
    %v1705 = vrot.slane %v1655, 1
    %v1706 = vrot.slane %v1694, 1
    %v1707 = vrot.slane %v1696, 1
    %v1712 = vadd.f32 %v531, %v1704
    %v1713 = vadd.f32 %v532, %v1705
    %v1714 = vadd.f32 %v533, %v1706
    %v1715 = vadd.f32 %v534, %v1707
    %v1716 = vxor.u32 %v1712, 2147483648
    %v1717 = vmul.f32 %v1716, 1.442695
    %v1718 = vpow.pop %v1717
    %v1719 = vadd.f32 %v1718, 1.0
    %v1720 = vrcp.pop %v1719
    %v1721 = vmul.f32 1.0, %v1720
    %v1722 = vxor.u32 %v1713, 2147483648
    %v1723 = vmul.f32 %v1722, 1.442695
    %v1724 = vpow.pop %v1723
    %v1725 = vadd.f32 %v1724, 1.0
    %v1726 = vrcp.pop %v1725
    %v1727 = vmul.f32 1.0, %v1726
    %v1728 = vtanh.pop %v1714
    %v1729 = vxor.u32 %v1715, 2147483648
    %v1730 = vmul.f32 %v1729, 1.442695
    %v1731 = vpow.pop %v1730
    %v1732 = vadd.f32 %v1731, 1.0
    %v1733 = vrcp.pop %v1732
    %v1734 = vmul.f32 1.0, %v1733
    %v1736 = vrot.slane %v1611, 7
    %v1738 = vmul.f32 %v1727, %v1736
    %v1739 = vmul.f32 %v1721, %v1728
    %v1740 = vadd.f32 %v1738, %v1739
    %v1741 = vtanh.pop %v1740
    %v1742 = vmul.f32 %v1734, %v1741
    %vm1743 = vcmask 1040384
    %v1744 = vsel %vm1743, %v837, %v963
    %vm1745 = vcmask 1041408
    %v1746 = vsel %vm1745, %v1744, %v1093
    %vm1747 = vcmask 1042432
    %v1748 = vsel %vm1747, %v1746, %v1222
    %vm1749 = vcmask 1043456
    %v1750 = vsel %vm1749, %v1748, %v1353
    %vm1751 = vcmask 1044480
    %v1752 = vsel %vm1751, %v1750, %v1482
    %vm1753 = vcmask 1045504
    %v1754 = vsel %vm1753, %v1752, %v1613
    %vm1755 = vcmask 1046528
    %v1756 = vsel %vm1755, %v1754, %v1742
    %1757 = vst [vmem:[#allocation3] sm:$0xff] %v1756
    %v1758 = vsel %vm1743, %v835, %v961
    %v1759 = vsel %vm1745, %v1758, %v1091
    %v1760 = vsel %vm1747, %v1759, %v1220
    %v1761 = vsel %vm1749, %v1760, %v1351
    %v1762 = vsel %vm1751, %v1761, %v1480
    %v1763 = vsel %vm1753, %v1762, %v1611
    %v1764 = vsel %vm1755, %v1763, %v1740
    %1765 = vst [vmem:[#allocation4] sm:$0xff] %v1764
    %v1766 = vld [vmem:[#allocation3 + $0x7] sm:$0x1]
    %1767 = vst [vmem:[#allocation15] sm:$0x1] %v1766
    %v1768 = vld [vmem:[#allocation4 + $0x7] sm:$0x1]
    %1769 = vst [vmem:[#allocation17] sm:$0x1] %v1768
    %v1770 = vld [vmem:[#allocation3] sm:$0xff]
    %v1771 = vxor.u32 %v1770, 2147483648
    %v1772 = vmul.f32 %v1771, 1.442695
    %v1773 = vpow.pop %v1772
    %v1774 = vadd.f32 %v1773, 1.0
    %v1775 = vrcp.pop %v1774
    %v1776 = vmul.f32 1.0, %v1775
    %v1777 = vpack.c.bf16 %v1776, %v1776
    %v1778 = vld [vmem:[#allocation13] sm:$0xf]
    %v1779 = vld [vmem:[#allocation13 + $0x4] sm:$0xf]
    %v1780 = vld [vmem:[#allocation13 + $0x8] sm:$0xf]
    %v1781 = vld [vmem:[#allocation13 + $0xc] sm:$0xf]
    %v1782 = vld [vmem:[#allocation13 + $0x10] sm:$0xf]
    %v1783 = vld [vmem:[#allocation13 + $0x14] sm:$0xf]
    %v1784 = vld [vmem:[#allocation13 + $0x18] sm:$0xf]
    %v1785 = vld [vmem:[#allocation13 + $0x1c] sm:$0xf]
    %v1786 = vld [vmem:[#allocation13 + $0x20] sm:$0xf]
    %v1787 = vld [vmem:[#allocation13 + $0x24] sm:$0xf]
    %v1788 = vld [vmem:[#allocation13 + $0x28] sm:$0xf]
    %v1789 = vld [vmem:[#allocation13 + $0x2c] sm:$0xf]
    %v1790 = vld [vmem:[#allocation13 + $0x30] sm:$0xf]
    %v1791 = vld [vmem:[#allocation13 + $0x34] sm:$0xf]
    %v1792 = vld [vmem:[#allocation13 + $0x38] sm:$0xf]
    %v1793 = vld [vmem:[#allocation13 + $0x3c] sm:$0xf]
    %v1794 = vld [vmem:[%s7] sm:$0x1]
    %v1796 = vlaneseq
    %v1797 = vshrl.u32 %v1796, 7
    %v1798 = vsub.s32 0, %v1797
    %v1799 = vrot.slane %v1794, %v1798
    %v1817 = vunpack.c.l.b16 %v1778
    %v1818 = vunpack.c.l.b16 %v1779
    %v1819 = vunpack.c.l.b16 %v1780
    %v1820 = vunpack.c.l.b16 %v1781
    %v1821 = vunpack.c.l.b16 %v1782
    %v1822 = vunpack.c.l.b16 %v1783
    %v1823 = vunpack.c.l.b16 %v1784
    %v1824 = vunpack.c.l.b16 %v1785
    %v1825 = vunpack.c.l.b16 %v1786
    %v1826 = vunpack.c.l.b16 %v1787
    %v1827 = vunpack.c.l.b16 %v1788
    %v1828 = vunpack.c.l.b16 %v1789
    %v1829 = vunpack.c.l.b16 %v1790
    %v1830 = vunpack.c.l.b16 %v1791
    %v1831 = vunpack.c.l.b16 %v1792
    %v1832 = vunpack.c.l.b16 %v1793
    %v1833 = vpack.c.b16 %v1818, %v1817
    %v1834 = vpack.c.b16 %v1820, %v1819
    %v1835 = vpack.c.b16 %v1822, %v1821
    %v1836 = vpack.c.b16 %v1824, %v1823
    %v1837 = vpack.c.b16 %v1826, %v1825
    %v1838 = vpack.c.b16 %v1828, %v1827
    %v1839 = vpack.c.b16 %v1830, %v1829
    %v1840 = vpack.c.b16 %v1832, %v1831
    %1849 = vmatprep.subr.bf16.mxu0 0
    %1850 = vmatpush1.bf16.msra.mxu0 %v1833
    %1851 = vmatprep.subr.bf16.mxu0 0
    %1852 = vmatpush1.bf16.msra.mxu0 %v1834
    %1853 = vmatprep.subr.bf16.mxu0 0
    %1854 = vmatpush1.bf16.msra.mxu0 %v1835
    %1855 = vmatprep.subr.bf16.mxu0 0
    %1856 = vmatpush1.bf16.msra.mxu0 %v1836
    %1857 = vmatprep.subr.bf16.mxu0 0
    %1858 = vmatpush1.bf16.msra.mxu0 %v1837
    %1859 = vmatprep.subr.bf16.mxu0 0
    %1860 = vmatpush1.bf16.msra.mxu0 %v1838
    %1861 = vmatprep.subr.bf16.mxu0 0
    %1862 = vmatpush1.bf16.msra.mxu0 %v1839
    %1863 = vmatprep.subr.bf16.mxu0 0
    %1864 = vmatpush1.bf16.msra.mxu0 %v1840
    %1865 = vmatprep.subr.bf16.mxu0 0
    %1866 = vmatpush1.bf16.msra.mxu0 0
    %1867 = vmatprep.subr.bf16.mxu0 0
    %1868 = vmatpush1.bf16.msra.mxu0 0
    %1869 = vmatprep.subr.bf16.mxu0 0
    %1870 = vmatpush1.bf16.msra.mxu0 0
    %1871 = vmatprep.subr.bf16.mxu0 0
    %1872 = vmatpush1.bf16.msra.mxu0 0
    %1873 = vmatprep.subr.bf16.mxu0 0
    %1874 = vmatpush1.bf16.msra.mxu0 0
    %1875 = vmatprep.subr.bf16.mxu0 0
    %1876 = vmatpush1.bf16.msra.mxu0 0
    %1877 = vmatprep.subr.bf16.mxu0 0
    %1878 = vmatpush1.bf16.msra.mxu0 0
    %1879 = vmatprep.subr.bf16.mxu0 0
    %1880 = vmatpush1.bf16.msra.mxu0 0
    %1881 = vmatprep.mubr.bf16.mxu0 0
    %1882 = vmatmul.mubr.bf16.gmra.mrb[0].mxu0 %v1777
    %v1883 = vpop.f32.mrb[0].mxu0
    %v1884 = vadd.f32 %v1799, %v1883
    %v1885 = vpop.f32.mrb[0].mxu0
    %v1886 = vpop.f32.mrb[0].mxu0
    %v1887 = vpop.f32.mrb[0].mxu0
    %1888 = vdwg.mxu0
    %1889 = vst [vmem:[#allocation14] sm:$0xff] %v1884
    // Predicated region
    $region62: #{tpu_custom_call.1} parent=1 // pred_check
      _
    $region63: #{tpu_custom_call.1} parent=1 // pred_check_branch
      %1891 = sbr.rel (0) target = $region65
    $region64: #{tpu_custom_call.1} parent=1 // pred_region
      %s1893 = ssub.s32 128, 128
      %1894 = vsyncadd [#allocation7], %s1893
      %s1896 = sshll.u32 [#allocation14], 4
      %s1897 = int_to_ptr.vmem [resolvable:$true] %s1896
      %1899 = dma.vmem_to_hbm [thread:$0]  %s1897, 128, %s10, [#allocation7]
    $region65: #{tpu_custom_call.1} parent=1 // pred_fallthru
      _
    // Predicated region
    $region66: #{tpu_custom_call.1} parent=1 // pred_check
      _
    $region67: #{tpu_custom_call.1} parent=1 // pred_check_branch
      %1901 = sbr.rel (0) target = $region69
    $region68: #{tpu_custom_call.1} parent=1 // pred_region
      %s1903 = ssub.s32 16, 16
      %1904 = vsyncadd [#allocation16], %s1903
      %s1906 = sshll.u32 [#allocation15], 4
      %s1907 = int_to_ptr.vmem [resolvable:$true] %s1906
      %1909 = dma.vmem_to_hbm [thread:$0]  %s1907, 16, %s11, [#allocation16]
    $region69: #{tpu_custom_call.1} parent=1 // pred_fallthru
      _
    // Predicated region
    $region70: #{tpu_custom_call.1} parent=1 // pred_check
      _
    $region71: #{tpu_custom_call.1} parent=1 // pred_check_branch
      %1911 = sbr.rel (0) target = $region73
    $region72: #{tpu_custom_call.1} parent=1 // pred_region
      %s1913 = ssub.s32 16, 16
      %1914 = vsyncadd [#allocation16], %s1913
      %s1916 = sshll.u32 [#allocation17], 4
      %s1917 = int_to_ptr.vmem [resolvable:$true] %s1916
      %1919 = dma.vmem_to_hbm [thread:$0]  %s1917, 16, %s12, [#allocation16]
    $region73: #{tpu_custom_call.1} parent=1 // pred_fallthru
      _
    // Predicated region
    $region74: #{tpu_custom_call.1} parent=1 // pred_check
      _
    $region75: #{tpu_custom_call.1} parent=1 // pred_check_branch
      %1921 = sbr.rel (0) target = $region77
    $region76: #{tpu_custom_call.1} parent=1 // pred_region
      %1922 = dma.done [#allocation7], 128
    $region77: #{tpu_custom_call.1} parent=1 // pred_fallthru
      _
    // Predicated region
    $region78: #{tpu_custom_call.1} parent=1 // pred_check
      _
    $region79: #{tpu_custom_call.1} parent=1 // pred_check_branch
      %1924 = sbr.rel (0) target = $region81
    $region80: #{tpu_custom_call.1} parent=1 // pred_region
      %1925 = dma.done [#allocation16], 16
    $region81: #{tpu_custom_call.1} parent=1 // pred_fallthru
      _
    // Predicated region
    $region82: #{tpu_custom_call.1} parent=1 // pred_check
      _
    $region83: #{tpu_custom_call.1} parent=1 // pred_check_branch
      %1927 = sbr.rel (0) target = $region85
    $region84: #{tpu_custom_call.1} parent=1 // pred_region
      %1928 = dma.done [#allocation16], 16
    $region85: #{tpu_custom_call.1} parent=1 // pred_fallthru
      _
    %1929 = vsyncpa [#allocation6], 1
    %1930 = vsyncpa [#allocation9], 1
    %1931 = vsyncpa [#allocation12], 1
    %1932 = vsyncpa [#allocation7], 1
    %1933 = vsyncpa [#allocation16], 1

</llo_original>
